<compile_context>
chip_gen: v6e
topology: v6e:2x2x1
jax: 0.10.0
libtpu: 0.0.40
codegen_flags: <defaults>
</compile_context>

<pallas_src>
import jax
import jax.numpy as jnp
from jax.experimental import pallas as pl
from jax.experimental.pallas import tpu as pltpu

# ----- small, tile-friendly hyperparameters (stand-ins for the PyTorch defaults) -----
B = 2            # batch
L = 16           # sequence length
EMB_NUM = 64     # vocab size            (PyTorch default 8429)
D = 128          # emb_dim               (PyTorch default 300)
C = 128          # output_channel        (PyTorch default 256)
NUM_CLASS = 2    # class_num
KS = (3, 4, 5)   # conv kernel heights (conv1/2/3); PyTorch padding = K-1
KMAX = max(KS)
PAD = KMAX - 1   # left zero padding of the shared input buffer (per-branch start offset
                 # is folded into the fused weight's tap position, not the LHS slices)

T_POOL = 32      # aligned time window evaluated by the fused conv (>= max t_out = L+4)
LP_EXT = 48      # padded sequence rows (multiple of 16 for bf16 sublane tiling; deepest
                 # fused-tap read is row T_POOL-1 + KMAX-1 = 35 < 48; extra rows are 0)
NCLS_PAD = 128   # classifier output padded to one full lane group -> unmasked stores

BATCH_BLOCK = 2  # batch rows stacked along M per grid step.  Toy B=2 -> one fat program.
                 # Real sizes: BB=8 fills M=256 (v6e/v7x MXU), BB=4 fills M=128 (v5e);
                 # on v7x keep NUM_BLOCKS >= 2 so both TensorCores are occupied.
assert B % BATCH_BLOCK == 0
NUM_BLOCKS = B // BATCH_BLOCK


def _kimcnn_kernel(emb_ref, w_ref, b_ref, fcw_ref, fcb_ref, out_ref):
    # emb_ref : (BATCH_BLOCK, LP_EXT, D)   bf16  zero-padded embeddings
    # w_ref   : (KMAX*D, 3*C)              bf16  fused conv weights (zero tap rows)
    # b_ref   : (1, 3*C)                   f32   fused conv bias
    # fcw_ref : (3*C, NCLS_PAD)            f32   classifier weight, zero-padded lanes
    # fcb_ref : (1, NCLS_PAD)              f32   classifier bias,   zero-padded lanes
    # out_ref : (1, BATCH_BLOCK, NCLS_PAD) f32   lane-dense logits (cols >= NUM_CLASS are 0)
    x = emb_ref[...]                                          # one load of the whole block

    # --- shared im2col: KMAX shifted slabs, built once for all branches & batch rows ---
    # TODO(synk): the k=1..4 slice starts are not bf16 sublane-pack aligned; a
    #             pltpu.roll(axis=sublane) formulation would push these relayout
    #             copies onto the otherwise-idle XLU slot.
    slabs = [
        x[:, k:k + T_POOL, :].reshape(BATCH_BLOCK * T_POOL, D)
        for k in range(KMAX)
    ]
    lhs = jnp.concatenate(slabs, axis=-1)                     # (BB*T_POOL, KMAX*D) bf16

    # --- ONE fused conv matmul for all three branches ---
    acc = jnp.dot(lhs, w_ref[...],
                  preferred_element_type=jnp.float32)         # (BB*T_POOL, 3*C) f32

    # --- one bias + ReLU + time-mask epilogue ---
    act = jnp.maximum(acc + b_ref[...], 0.0)                  # stays f32 (v5e VPU has no bf16)
    # Rows t >= t_out of branch ci only ever see zero padding; ReLU output >= 0, so
    # zeroing them keeps the max-pool exact.  t_out is 18 / 19 / 20 per 128-lane block.
    t_row = jax.lax.broadcasted_iota(
        jnp.int32, (BATCH_BLOCK * T_POOL, 1), 0) % T_POOL
    t_out = jnp.concatenate(
        [jnp.full((1, C), L + K - 1, jnp.int32) for K in KS], axis=1)   # (1, 3*C) const
    act = jnp.where(t_row < t_out, act, 0.0)

    # --- one max-pool over time for all branches / batch rows ---
    feat = jnp.max(act.reshape(BATCH_BLOCK, T_POOL, 3 * C), axis=1)     # (BB, 3*C)

    # nn.Dropout is identity in eval mode.  Classifier kept in-kernel; output padded to
    # 128 lanes so the store is an unmasked vst (wrapper slices [:, :NUM_CLASS]).
    logits = jnp.dot(feat, fcw_ref[...],
                     preferred_element_type=jnp.float32) + fcb_ref[...]
    out_ref[0] = logits


@jax.jit
def kimcnn_pallas(emb_pad, w_fused, b_fused, fcw_pad, fcb_pad):
    out = pl.pallas_call(
        _kimcnn_kernel,
        out_shape=jax.ShapeDtypeStruct((NUM_BLOCKS, BATCH_BLOCK, NCLS_PAD), jnp.float32),
        grid=(NUM_BLOCKS,),
        in_specs=[
            pl.BlockSpec((BATCH_BLOCK, LP_EXT, D), lambda i: (i, 0, 0)),   # embeddings
            pl.BlockSpec((KMAX * D, 3 * C), lambda i: (0, 0)),             # fused conv W
            pl.BlockSpec((1, 3 * C), lambda i: (0, 0)),                    # fused conv b
            pl.BlockSpec((3 * C, NCLS_PAD), lambda i: (0, 0)),             # fc weight (padded)
            pl.BlockSpec((1, NCLS_PAD), lambda i: (0, 0)),                 # fc bias   (padded)
        ],
        out_specs=pl.BlockSpec((1, BATCH_BLOCK, NCLS_PAD), lambda i: (i, 0, 0)),
        compiler_params=pltpu.CompilerParams(
            dimension_semantics=("parallel",)),   # shards batch blocks across TCs on v7x
    )(emb_pad, w_fused, b_fused, fcw_pad, fcb_pad)
    return out.reshape(B, NCLS_PAD)[:, :NUM_CLASS]


def reference_forward(x_ids, word_emb, conv_w_pt, conv_b, fc_w_pt, fc_b):
    """Pure-JAX replica of the PyTorch forward (NCHW conv, eval-mode dropout), f32."""
    emb = jnp.take(word_emb, x_ids, axis=0)         # (B, L, D)
    xin = emb[:, None, :, :]                        # (B, 1, L, D)  NCHW
    feats = []
    for K, w, b in zip(KS, conv_w_pt, conv_b):
        out = jax.lax.conv_general_dilated(
            xin, w, window_strides=(1, 1),
            padding=((K - 1, K - 1), (0, 0)),
            dimension_numbers=("NCHW", "OIHW", "NCHW"),
            precision=jax.lax.Precision.HIGHEST)
        out = jnp.maximum(out + b[None, :, None, None], 0.0)[:, :, :, 0]  # (B, C, T)
        feats.append(jnp.max(out, axis=2))          # (B, C)
    feat = jnp.concatenate(feats, axis=1)           # (B, 3C)
    return feat @ fc_w_pt.T + fc_b[None, :]


if __name__ == "__main__":
    key = jax.random.PRNGKey(0)
    keys = jax.random.split(key, 10)

    # Deterministic synthetic parameters (shapes follow nn.Module __init__)
    word_emb = jax.random.normal(keys[0], (EMB_NUM, D), jnp.float32)
    conv_w_pt = [0.05 * jax.random.normal(keys[1 + i], (C, 1, K, D), jnp.float32)
                 for i, K in enumerate(KS)]                       # nn.Conv2d weight (O,I,H,W)
    conv_b = [0.05 * jax.random.normal(keys[4 + i], (C,), jnp.float32) for i in range(3)]
    fc_w_pt = 0.05 * jax.random.normal(keys[7], (NUM_CLASS, 3 * C), jnp.float32)
    fc_b = 0.05 * jax.random.normal(keys[8], (NUM_CLASS,), jnp.float32)

    # Inputs: token ids + (unused in forward) lengths
    x_ids = jax.random.randint(keys[9], (B, L), 0, EMB_NUM)
    length = jnp.full((B,), L, jnp.int32)   # `length` is never used by KimCNN.forward

    # --- fused conv RHS: (KMAX*D, 3*C) bf16.  Branch ci occupies lane block
    #     ci*C:(ci+1)*C; tap k of a K-tall kernel sits at rows (KMAX-K+k)*D:(KMAX-K+k+1)*D,
    #     all other tap rows are zero (contribute exactly 0). ---
    w_blocks = []
    for K, w in zip(KS, conv_w_pt):
        wb = jnp.reshape(jnp.transpose(w[:, 0], (1, 2, 0)), (K * D, C))   # (K*D, C)
        wb = jnp.pad(wb, (((KMAX - K) * D, 0), (0, 0)))                   # zero leading taps
        w_blocks.append(wb)
    w_fused = jnp.concatenate(w_blocks, axis=1).astype(jnp.bfloat16)      # (640, 384) bf16
    b_fused = jnp.concatenate(conv_b).reshape(1, 3 * C)                   # (1, 384)   f32

    # --- classifier padded to 128 output lanes (zeros beyond NUM_CLASS) ---
    fcw_pad = jnp.pad(jnp.transpose(fc_w_pt), ((0, 0), (0, NCLS_PAD - NUM_CLASS)))
    fcb_pad = jnp.pad(fc_b, (0, NCLS_PAD - NUM_CLASS)).reshape(1, NCLS_PAD)

    # Glue: embedding lookup + zero padding (left pad = max conv padding; right pad
    # extended so the aligned T_POOL window + deepest tap never reads out of range).
    emb = jnp.take(word_emb, x_ids, axis=0)                               # (B, L, D)
    emb_pad = jnp.pad(emb, ((0, 0), (PAD, LP_EXT - L - PAD), (0, 0))).astype(jnp.bfloat16)

    logits = kimcnn_pallas(emb_pad, w_fused, b_fused, fcw_pad, fcb_pad)
    logits = jax.block_until_ready(logits)

    ref = reference_forward(x_ids, word_emb, conv_w_pt, conv_b, fc_w_pt, fc_b)
    ref = jax.block_until_ready(ref)

    # Tolerance reflects bf16 conv operands (f32 accumulation) vs the f32 HIGHEST
    # reference; observed error is ~1e-2 on O(1) logits.
    max_err = float(jnp.max(jnp.abs(logits - ref)))
    assert logits.shape == (B, NUM_CLASS)
    assert max_err < 5e-2, f"mismatch vs reference: max abs err {max_err}"

    print("KERNEL_OK")
</pallas_src>

<mosaic_0001>
module attributes {stable_mosaic.version = 11 : i64} {
  func.func @_kimcnn_kernel(%arg0: i32, %arg1: memref<2x48x128xbf16, #tpu.memory_space<vmem>>, %arg2: memref<640x384xbf16, #tpu.memory_space<vmem>>, %arg3: memref<1x384xf32, #tpu.memory_space<vmem>>, %arg4: memref<384x128xf32, #tpu.memory_space<vmem>>, %arg5: memref<1x128xf32, #tpu.memory_space<vmem>>, %arg6: memref<1x2x128xf32, #tpu.memory_space<vmem>>) attributes {dimension_semantics = [#tpu.dimension_semantics<parallel>], iteration_bounds = array<i64: 1>, scalar_prefetch = 0 : i64, scratch_operands = 0 : i64, tpu.core_type = #tpu.core_type<tc>, window_params = [{transform_indices = @transform_0, window_bounds = array<i64: 2, 48, 128>}, {pipeline_mode = #tpu.pipeline_mode<synchronous>, transform_indices = @transform_1, window_bounds = array<i64: 640, 384>}, {pipeline_mode = #tpu.pipeline_mode<synchronous>, transform_indices = @transform_2, window_bounds = array<i64: 1, 384>}, {pipeline_mode = #tpu.pipeline_mode<synchronous>, transform_indices = @transform_3, window_bounds = array<i64: 384, 128>}, {pipeline_mode = #tpu.pipeline_mode<synchronous>, transform_indices = @transform_4, window_bounds = array<i64: 1, 128>}, {transform_indices = @transform_5, window_bounds = array<i64: 1, 2, 128>}]} {
    %c0 = arith.constant 0 : index
    %c0_0 = arith.constant 0 : index
    %c0_1 = arith.constant 0 : index
    %0 = vector.load %arg1[%c0, %c0_0, %c0_1] : memref<2x48x128xbf16, #tpu.memory_space<vmem>>, vector<2x48x128xbf16>
    %1 = vector.extract_strided_slice %0 {offsets = [0, 0, 0], sizes = [2, 32, 128], strides = [1, 1, 1]} : vector<2x48x128xbf16> to vector<2x32x128xbf16>
    %2 = vector.shape_cast %1 : vector<2x32x128xbf16> to vector<64x128xbf16>
    %3 = vector.extract_strided_slice %0 {offsets = [0, 1, 0], sizes = [2, 32, 128], strides = [1, 1, 1]} : vector<2x48x128xbf16> to vector<2x32x128xbf16>
    %4 = vector.shape_cast %3 : vector<2x32x128xbf16> to vector<64x128xbf16>
    %5 = vector.extract_strided_slice %0 {offsets = [0, 2, 0], sizes = [2, 32, 128], strides = [1, 1, 1]} : vector<2x48x128xbf16> to vector<2x32x128xbf16>
    %6 = vector.shape_cast %5 : vector<2x32x128xbf16> to vector<64x128xbf16>
    %7 = vector.extract_strided_slice %0 {offsets = [0, 3, 0], sizes = [2, 32, 128], strides = [1, 1, 1]} : vector<2x48x128xbf16> to vector<2x32x128xbf16>
    %8 = vector.shape_cast %7 : vector<2x32x128xbf16> to vector<64x128xbf16>
    %9 = vector.extract_strided_slice %0 {offsets = [0, 4, 0], sizes = [2, 32, 128], strides = [1, 1, 1]} : vector<2x48x128xbf16> to vector<2x32x128xbf16>
    %10 = vector.shape_cast %9 : vector<2x32x128xbf16> to vector<64x128xbf16>
    %11 = tpu.concatenate %2, %4, %6, %8, %10 in 1 : vector<64x128xbf16>, vector<64x128xbf16>, vector<64x128xbf16>, vector<64x128xbf16>, vector<64x128xbf16> -> vector<64x640xbf16>
    %c0_2 = arith.constant 0 : index
    %c0_3 = arith.constant 0 : index
    %12 = vector.load %arg2[%c0_2, %c0_3] : memref<640x384xbf16, #tpu.memory_space<vmem>>, vector<640x384xbf16>
    %cst = arith.constant dense<0.000000e+00> : vector<64x384xf32>
    %13 = tpu.matmul %11, %12, %cst {dimension_numbers = #tpu.dot_dimension_numbers<[1], [0], [0], [1], [0, 0, 1, 1], [], []>} : vector<64x640xbf16>, vector<640x384xbf16>, vector<64x384xf32> -> vector<64x384xf32>
    %c0_4 = arith.constant 0 : index
    %c0_5 = arith.constant 0 : index
    %14 = vector.load %arg3[%c0_4, %c0_5] : memref<1x384xf32, #tpu.memory_space<vmem>>, vector<1x384xf32>
    %15 = vector.broadcast %14 : vector<1x384xf32> to vector<64x384xf32>
    %16 = arith.addf %13, %15 : vector<64x384xf32>
    %cst_6 = arith.constant 0.000000e+00 : f32
    %17 = vector.broadcast %cst_6 : f32 to vector<64x384xf32>
    %18 = arith.maximumf %16, %17 : vector<64x384xf32>
    %19 = tpu.iota {dimensions = array<i32: 0>} : vector<64x1xi32>
    %c32_i32 = arith.constant 32 : i32
    %c0_i32 = arith.constant 0 : i32
    %20 = arith.cmpi eq, %c32_i32, %c0_i32 : i32
    %c1_i32 = arith.constant 1 : i32
    %21 = arith.select %20, %c1_i32, %c32_i32 : i32
    %22 = vector.broadcast %21 : i32 to vector<64x1xi32>
    %23 = arith.remsi %19, %22 : vector<64x1xi32>
    %c0_i32_7 = arith.constant 0 : i32
    %24 = vector.broadcast %c0_i32_7 : i32 to vector<64x1xi32>
    %25 = arith.cmpi ne, %23, %24 : vector<64x1xi32>
    %c0_i32_8 = arith.constant 0 : i32
    %26 = vector.broadcast %c0_i32_8 : i32 to vector<64x1xi32>
    %27 = arith.cmpi slt, %23, %26 : vector<64x1xi32>
    %c0_i32_9 = arith.constant 0 : i32
    %28 = arith.cmpi slt, %21, %c0_i32_9 : i32
    %29 = vector.broadcast %28 : i1 to vector<64x1xi1>
    %30 = vector.broadcast %29 : vector<64x1xi1> to vector<64x1xi1>
    %31 = arith.xori %27, %30 : vector<64x1xi1>
    %32 = arith.andi %31, %25 : vector<64x1xi1>
    %33 = vector.broadcast %21 : i32 to vector<64x1xi32>
    %34 = arith.addi %23, %33 : vector<64x1xi32>
    %35 = arith.select %32, %34, %23 : vector<64x1xi1>, vector<64x1xi32>
    %c18_i32 = arith.constant 18 : i32
    %36 = vector.broadcast %c18_i32 : i32 to vector<1x128xi32>
    %c19_i32 = arith.constant 19 : i32
    %37 = vector.broadcast %c19_i32 : i32 to vector<1x128xi32>
    %c20_i32 = arith.constant 20 : i32
    %38 = vector.broadcast %c20_i32 : i32 to vector<1x128xi32>
    %39 = tpu.concatenate %36, %37, %38 in 1 : vector<1x128xi32>, vector<1x128xi32>, vector<1x128xi32> -> vector<1x384xi32>
    %40 = vector.broadcast %35 : vector<64x1xi32> to vector<64x384xi32>
    %41 = vector.broadcast %39 : vector<1x384xi32> to vector<64x384xi32>
    %42 = arith.cmpi slt, %40, %41 : vector<64x384xi32>
    %cst_10 = arith.constant 0.000000e+00 : f32
    %43 = vector.broadcast %cst_10 : f32 to vector<64x384xf32>
    %44 = arith.select %42, %18, %43 : vector<64x384xi1>, vector<64x384xf32>
    %45 = vector.shape_cast %44 : vector<64x384xf32> to vector<2x32x384xf32>
    %cst_11 = arith.constant dense<0xFF800000> : vector<2x384xf32>
    %46 = vector.multi_reduction <maximumf>, %45, %cst_11 [1] : vector<2x32x384xf32> to vector<2x384xf32>
    %c0_12 = arith.constant 0 : index
    %c0_13 = arith.constant 0 : index
    %47 = vector.load %arg4[%c0_12, %c0_13] : memref<384x128xf32, #tpu.memory_space<vmem>>, vector<384x128xf32>
    %cst_14 = arith.constant dense<0.000000e+00> : vector<2x128xf32>
    %48 = tpu.matmul %46, %47, %cst_14 {dimension_numbers = #tpu.dot_dimension_numbers<[1], [0], [0], [1], [0, 0, 1, 1], [], []>} : vector<2x384xf32>, vector<384x128xf32>, vector<2x128xf32> -> vector<2x128xf32>
    %c0_15 = arith.constant 0 : index
    %c0_16 = arith.constant 0 : index
    %49 = vector.load %arg5[%c0_15, %c0_16] : memref<1x128xf32, #tpu.memory_space<vmem>>, vector<1x128xf32>
    %50 = vector.broadcast %49 : vector<1x128xf32> to vector<2x128xf32>
    %51 = arith.addf %48, %50 : vector<2x128xf32>
    %c0_17 = arith.constant 0 : index
    %c0_18 = arith.constant 0 : index
    %c0_19 = arith.constant 0 : index
    %52 = vector.load %arg6[%c0_17, %c0_18, %c0_19] : memref<1x2x128xf32, #tpu.memory_space<vmem>>, vector<1x2x128xf32>
    %53 = vector.shape_cast %52 : vector<1x2x128xf32> to vector<2x128xf32>
    %54 = vector.shape_cast %51 : vector<2x128xf32> to vector<1x2x128xf32>
    tpu.vector_store %arg6[%c0_17, %c0_18, %c0_19], %54 {strides = array<i32>} : memref<1x2x128xf32, #tpu.memory_space<vmem>>, vector<1x2x128xf32>,
    return
  }
  func.func @transform_0(%arg0: i32) -> (i32, i32, i32) {
    %c0_i32 = arith.constant 0 : i32
    %c0_i32_0 = arith.constant 0 : i32
    %c0_i32_1 = arith.constant 0 : i32
    return %arg0, %c0_i32, %c0_i32_0 : i32, i32, i32
  }
  func.func @transform_1(%arg0: i32) -> (i32, i32) {
    %c0_i32 = arith.constant 0 : i32
    %c0_i32_0 = arith.constant 0 : i32
    %c0_i32_1 = arith.constant 0 : i32
    return %c0_i32, %c0_i32_0 : i32, i32
  }
  func.func @transform_2(%arg0: i32) -> (i32, i32) {
    %c0_i32 = arith.constant 0 : i32
    %c0_i32_0 = arith.constant 0 : i32
    %c0_i32_1 = arith.constant 0 : i32
    return %c0_i32, %c0_i32_0 : i32, i32
  }
  func.func @transform_3(%arg0: i32) -> (i32, i32) {
    %c0_i32 = arith.constant 0 : i32
    %c0_i32_0 = arith.constant 0 : i32
    %c0_i32_1 = arith.constant 0 : i32
    return %c0_i32, %c0_i32_0 : i32, i32
  }
  func.func @transform_4(%arg0: i32) -> (i32, i32) {
    %c0_i32 = arith.constant 0 : i32
    %c0_i32_0 = arith.constant 0 : i32
    %c0_i32_1 = arith.constant 0 : i32
    return %c0_i32, %c0_i32_0 : i32, i32
  }
  func.func @transform_5(%arg0: i32) -> (i32, i32, i32) {
    %c0_i32 = arith.constant 0 : i32
    %c0_i32_0 = arith.constant 0 : i32
    %c0_i32_1 = arith.constant 0 : i32
    return %arg0, %c0_i32, %c0_i32_0 : i32, i32, i32
  }
}

</mosaic_0001>

<llo_original>
// kernel: kimcnn_pallas.1
$region0: #{kimcnn_pallas.1}
  #allocation0 [shape = 'u32[]', space=smem, size = 0x4, offset = 0x4, fixed_abs, tag = 'smem constant byte address 0x4 - core index']
  #allocation1 [shape = 'u32[144,128]{1,0:T(1,128)}', space=vmem, size = 0x12000, scoped, tag = 'internal scratch']
  %s0 = inlined_call_operand.hbm [shape: bf16[2,48,128], index: 0, kind: input, shape index: {}]
  %s1 = inlined_call_operand.hbm [shape: bf16[640,384], index: 1, kind: input, shape index: {}]
  %s2 = inlined_call_operand.vmem [shape: f32[1,384], index: 2, kind: input, shape index: {}]
  %s3 = inlined_call_operand.hbm [shape: f32[384,128], index: 3, kind: input, shape index: {}]
  %s4 = inlined_call_operand.vmem [shape: f32[1,128], index: 4, kind: input, shape index: {}]
  %s5 = inlined_call_operand.hbm [shape: f32[1,2,128], index: 5, kind: output, shape index: {}]
  %s6 = sld [smem:[#allocation0]]
  $region42: #{kimcnn_pallas.1} parent=0
    _
  %s8 = ssub.s32 1, %s6
  %s9 = scalar_select 0, %s8, %s6
  $region1: #{kimcnn_pallas.1} parent=0
    #allocation2 [shape = 'u8[24576]{0}', space=vmem, size = 0x6000, scoped, tag = 'input window, operand 0, single buffered']
    #allocation3 [shape = 's32[1]{0}', space=sflag, size = 0x4, scoped, tag = 'scoped memory for kimcnn_pallas.1']
    #allocation4 [shape = 's32[1]{0}', space=sflag, size = 0x4, scoped, tag = 'scoped memory for kimcnn_pallas.1']
    #allocation5 [shape = 'u8[491520]{0}', space=vmem, size = 0x78000, scoped, tag = 'input window, operand 1, single buffered']
    #allocation6 [shape = 's32[1]{0}', space=sflag, size = 0x4, scoped, tag = 'scoped memory for kimcnn_pallas.1']
    #allocation7 [shape = 'u8[196608]{0}', space=vmem, size = 0x30000, scoped, tag = 'input window, operand 3, single buffered']
    #allocation8 [shape = 'u8[1024]{0}', space=vmem, size = 0x400, scoped, tag = 'output window, operand 0, single buffered']
    %10 = vsyncpa [#allocation3], 0
    %11 = vsyncpa [#allocation6], 0
    %12 = vsyncpa [#allocation4], 0
    // Predicated region
    $region2: #{kimcnn_pallas.1} parent=1 // pred_check
      _
    $region3: #{kimcnn_pallas.1} parent=1 // pred_check_branch
      %14 = sbr.rel (0) target = $region5
    $region4: #{kimcnn_pallas.1} parent=1 // pred_region
      %s16 = ssub.s32 768, 768
      %17 = vsyncadd [#allocation3], %s16
      %s18 = sshll.u32 [#allocation2], 4
      %s19 = int_to_ptr.vmem [resolvable:$true] %s18
      %24 = dma.hbm_to_vmem [thread:$0]  %s0, 768, %s19, [#allocation3], 64, 64, 4
    $region5: #{kimcnn_pallas.1} parent=1 // pred_fallthru
      _
    // Predicated region
    $region6: #{kimcnn_pallas.1} parent=1 // pred_check
      _
    $region7: #{kimcnn_pallas.1} parent=1 // pred_check_branch
      %26 = sbr.rel (0) target = $region9
    $region8: #{kimcnn_pallas.1} parent=1 // pred_region
      %s28 = ssub.s32 15360, 15360
      %29 = vsyncadd [#allocation6], %s28
      %s30 = sshll.u32 [#allocation5], 4
      %s31 = int_to_ptr.vmem [resolvable:$true] %s30
      %36 = dma.hbm_to_vmem [thread:$0]  %s1, 15360, %s31, [#allocation6], 192, 192, 12
    $region9: #{kimcnn_pallas.1} parent=1 // pred_fallthru
      _
    // Predicated region
    $region10: #{kimcnn_pallas.1} parent=1 // pred_check
      _
    $region11: #{kimcnn_pallas.1} parent=1 // pred_check_branch
      %38 = sbr.rel (0) target = $region13
    $region12: #{kimcnn_pallas.1} parent=1 // pred_region
      _
    $region13: #{kimcnn_pallas.1} parent=1 // pred_fallthru
      _
    // Predicated region
    $region14: #{kimcnn_pallas.1} parent=1 // pred_check
      _
    $region15: #{kimcnn_pallas.1} parent=1 // pred_check_branch
      %40 = sbr.rel (0) target = $region17
    $region16: #{kimcnn_pallas.1} parent=1 // pred_region
      %s42 = ssub.s32 6144, 6144
      %43 = vsyncadd [#allocation6], %s42
      %s44 = sshll.u32 [#allocation7], 4
      %s45 = int_to_ptr.vmem [resolvable:$true] %s44
      %50 = dma.hbm_to_vmem [thread:$0]  %s3, 6144, %s45, [#allocation6], 128, 128, 8
    $region17: #{kimcnn_pallas.1} parent=1 // pred_fallthru
      _
    // Predicated region
    $region18: #{kimcnn_pallas.1} parent=1 // pred_check
      _
    $region19: #{kimcnn_pallas.1} parent=1 // pred_check_branch
      %52 = sbr.rel (0) target = $region21
    $region20: #{kimcnn_pallas.1} parent=1 // pred_region
      _
    $region21: #{kimcnn_pallas.1} parent=1 // pred_fallthru
      _
    // Predicated region
    $region22: #{kimcnn_pallas.1} parent=1 // pred_check
      _
    $region23: #{kimcnn_pallas.1} parent=1 // pred_check_branch
      %54 = sbr.rel (0) target = $region25
    $region24: #{kimcnn_pallas.1} parent=1 // pred_region
      %55 = dma.done [#allocation3], 768
    $region25: #{kimcnn_pallas.1} parent=1 // pred_fallthru
      _
    // Predicated region
    $region26: #{kimcnn_pallas.1} parent=1 // pred_check
      _
    $region27: #{kimcnn_pallas.1} parent=1 // pred_check_branch
      %57 = sbr.rel (0) target = $region29
    $region28: #{kimcnn_pallas.1} parent=1 // pred_region
      %58 = dma.done [#allocation6], 15360
    $region29: #{kimcnn_pallas.1} parent=1 // pred_fallthru
      _
    // Predicated region
    $region30: #{kimcnn_pallas.1} parent=1 // pred_check
      _
    $region31: #{kimcnn_pallas.1} parent=1 // pred_check_branch
      %60 = sbr.rel (0) target = $region33
    $region32: #{kimcnn_pallas.1} parent=1 // pred_region
      %61 = dma.done [#allocation6], 6144
    $region33: #{kimcnn_pallas.1} parent=1 // pred_fallthru
      _
    %v63 = vld [vmem:[#allocation2] sm:$0xf]
    %v64 = vld [vmem:[#allocation2 + $0x4] sm:$0xf]
    %v65 = vld [vmem:[#allocation2 + $0x8] sm:$0xf]
    %v66 = vld [vmem:[#allocation2 + $0xc] sm:$0xf]
    %v67 = vld [vmem:[#allocation2 + $0x10] sm:$0xf]
    %v68 = vld [vmem:[#allocation2 + $0x18] sm:$0xf]
    %v69 = vld [vmem:[#allocation2 + $0x1c] sm:$0xf]
    %v70 = vld [vmem:[#allocation2 + $0x20] sm:$0xf]
    %v71 = vld [vmem:[#allocation2 + $0x24] sm:$0xf]
    %v72 = vld [vmem:[#allocation2 + $0x28] sm:$0xf]
    %vm73 = vsmask.f32 3328
    %vm74 = vsmask.f32 7440
    %vm75 = vmor %vm73, %vm74
    %v77 = vshrl.u32 %v63, 16
    %v79 = vrot.slane %v77, 4
    %v80 = vshll.u32 %v63, 16
    %v82 = vrot.slane %v80, 5
    %v83 = vor.u32 %v79, %v82
    %v84 = vrot.slane %v83, 4
    %v86 = vshll.u32 %v64, 16
    %v88 = vrot.slane %v86, 5
    %v89 = vsel %vm75, %v84, %v88
    %v90 = vshrl.u32 %v64, 16
    %v92 = vrot.slane %v90, 4
    %v93 = vor.u32 %v92, %v88
    %v94 = vrot.slane %v93, 4
    %v96 = vshll.u32 %v65, 16
    %v98 = vrot.slane %v96, 5
    %v99 = vsel %vm75, %v94, %v98
    %v100 = vshrl.u32 %v65, 16
    %v102 = vrot.slane %v100, 4
    %v103 = vor.u32 %v102, %v98
    %v104 = vrot.slane %v103, 4
    %v106 = vshll.u32 %v66, 16
    %v108 = vrot.slane %v106, 5
    %v109 = vsel %vm75, %v104, %v108
    %v110 = vshrl.u32 %v66, 16
    %v112 = vrot.slane %v110, 4
    %v113 = vor.u32 %v112, %v108
    %v114 = vrot.slane %v113, 4
    %v116 = vshll.u32 %v67, 16
    %v118 = vrot.slane %v116, 5
    %v119 = vsel %vm75, %v114, %v118
    %v121 = vshrl.u32 %v68, 16
    %v123 = vrot.slane %v121, 4
    %v124 = vshll.u32 %v68, 16
    %v126 = vrot.slane %v124, 5
    %v127 = vor.u32 %v123, %v126
    %v128 = vrot.slane %v127, 4
    %v130 = vshll.u32 %v69, 16
    %v132 = vrot.slane %v130, 5
    %v133 = vsel %vm75, %v128, %v132
    %v134 = vshrl.u32 %v69, 16
    %v136 = vrot.slane %v134, 4
    %v137 = vor.u32 %v136, %v132
    %v138 = vrot.slane %v137, 4
    %v140 = vshll.u32 %v70, 16
    %v142 = vrot.slane %v140, 5
    %v143 = vsel %vm75, %v138, %v142
    %v144 = vshrl.u32 %v70, 16
    %v146 = vrot.slane %v144, 4
    %v147 = vor.u32 %v146, %v142
    %v148 = vrot.slane %v147, 4
    %v150 = vshll.u32 %v71, 16
    %v152 = vrot.slane %v150, 5
    %v153 = vsel %vm75, %v148, %v152
    %v154 = vshrl.u32 %v71, 16
    %v156 = vrot.slane %v154, 4
    %v157 = vor.u32 %v156, %v152
    %v158 = vrot.slane %v157, 4
    %v160 = vshll.u32 %v72, 16
    %v162 = vrot.slane %v160, 5
    %v163 = vsel %vm75, %v158, %v162
    %vm174 = vcmask 1042432
    %vm175 = vcmask 1046532
    %vm176 = vmor %vm174, %vm175
    %v177 = vrot.slane %v63, 5
    %v178 = vrot.slane %v177, 4
    %v179 = vrot.slane %v64, 5
    %v180 = vsel %vm176, %v178, %v179
    %v181 = vrot.slane %v179, 4
    %v182 = vrot.slane %v65, 5
    %v183 = vsel %vm176, %v181, %v182
    %v184 = vrot.slane %v182, 4
    %v185 = vrot.slane %v66, 5
    %v186 = vsel %vm176, %v184, %v185
    %v187 = vrot.slane %v185, 4
    %v188 = vrot.slane %v67, 5
    %v189 = vsel %vm176, %v187, %v188
    %v190 = vrot.slane %v68, 5
    %v191 = vrot.slane %v190, 4
    %v192 = vrot.slane %v69, 5
    %v193 = vsel %vm176, %v191, %v192
    %v194 = vrot.slane %v192, 4
    %v195 = vrot.slane %v70, 5
    %v196 = vsel %vm176, %v194, %v195
    %v197 = vrot.slane %v195, 4
    %v198 = vrot.slane %v71, 5
    %v199 = vsel %vm176, %v197, %v198
    %v200 = vrot.slane %v198, 4
    %v201 = vrot.slane %v72, 5
    %v202 = vsel %vm176, %v200, %v201
    %vm203 = vsmask.f32 2304
    %vm204 = vsmask.f32 6416
    %vm205 = vmor %vm203, %vm204
    %v206 = vrot.slane %v77, 5
    %v207 = vrot.slane %v80, 6
    %v208 = vor.u32 %v206, %v207
    %v209 = vrot.slane %v208, 4
    %v210 = vrot.slane %v90, 5
    %v211 = vrot.slane %v86, 6
    %v212 = vor.u32 %v210, %v211
    %v213 = vsel %vm205, %v209, %v212
    %v214 = vrot.slane %v212, 4
    %v215 = vrot.slane %v100, 5
    %v216 = vrot.slane %v96, 6
    %v217 = vor.u32 %v215, %v216
    %v218 = vsel %vm205, %v214, %v217
    %v219 = vrot.slane %v217, 4
    %v220 = vrot.slane %v110, 5
    %v221 = vrot.slane %v106, 6
    %v222 = vor.u32 %v220, %v221
    %v223 = vsel %vm205, %v219, %v222
    %v224 = vrot.slane %v222, 4
    %v225 = vshrl.u32 %v67, 16
    %v227 = vrot.slane %v225, 5
    %v228 = vrot.slane %v116, 6
    %v229 = vor.u32 %v227, %v228
    %v230 = vsel %vm205, %v224, %v229
    %v231 = vrot.slane %v121, 5
    %v232 = vrot.slane %v124, 6
    %v233 = vor.u32 %v231, %v232
    %v234 = vrot.slane %v233, 4
    %v235 = vrot.slane %v134, 5
    %v236 = vrot.slane %v130, 6
    %v237 = vor.u32 %v235, %v236
    %v238 = vsel %vm205, %v234, %v237
    %v239 = vrot.slane %v237, 4
    %v240 = vrot.slane %v144, 5
    %v241 = vrot.slane %v140, 6
    %v242 = vor.u32 %v240, %v241
    %v243 = vsel %vm205, %v239, %v242
    %v244 = vrot.slane %v242, 4
    %v245 = vrot.slane %v154, 5
    %v246 = vrot.slane %v150, 6
    %v247 = vor.u32 %v245, %v246
    %v248 = vsel %vm205, %v244, %v247
    %v249 = vrot.slane %v247, 4
    %v250 = vshrl.u32 %v72, 16
    %v252 = vrot.slane %v250, 5
    %v253 = vrot.slane %v160, 6
    %v254 = vor.u32 %v252, %v253
    %v255 = vsel %vm205, %v249, %v254
    %vm256 = vcmask 1041408
    %vm257 = vcmask 1045508
    %vm258 = vmor %vm256, %vm257
    %v259 = vrot.slane %v63, 6
    %v260 = vrot.slane %v259, 4
    %v261 = vrot.slane %v64, 6
    %v262 = vsel %vm258, %v260, %v261
    %v263 = vrot.slane %v261, 4
    %v264 = vrot.slane %v65, 6
    %v265 = vsel %vm258, %v263, %v264
    %v266 = vrot.slane %v264, 4
    %v267 = vrot.slane %v66, 6
    %v268 = vsel %vm258, %v266, %v267
    %v269 = vrot.slane %v267, 4
    %v270 = vrot.slane %v67, 6
    %v271 = vsel %vm258, %v269, %v270
    %v272 = vrot.slane %v68, 6
    %v273 = vrot.slane %v272, 4
    %v274 = vrot.slane %v69, 6
    %v275 = vsel %vm258, %v273, %v274
    %v276 = vrot.slane %v274, 4
    %v277 = vrot.slane %v70, 6
    %v278 = vsel %vm258, %v276, %v277
    %v279 = vrot.slane %v277, 4
    %v280 = vrot.slane %v71, 6
    %v281 = vsel %vm258, %v279, %v280
    %v282 = vrot.slane %v280, 4
    %v283 = vrot.slane %v72, 6
    %v284 = vsel %vm258, %v282, %v283
    %v285 = vunpack.c.l.b16 %v63
    %v286 = vunpack.c.l.b16 %v64
    %v287 = vunpack.c.l.b16 %v65
    %v288 = vunpack.c.l.b16 %v66
    %v289 = vunpack.c.l.b16 %v68
    %v290 = vunpack.c.l.b16 %v69
    %v291 = vunpack.c.l.b16 %v70
    %v292 = vunpack.c.l.b16 %v71
    %v293 = vpack.c.b16 %v286, %v285
    %v294 = vpack.c.b16 %v288, %v287
    %v295 = vpack.c.b16 %v290, %v289
    %v296 = vpack.c.b16 %v292, %v291
    %v301 = vunpack.c.l.b16 %v89
    %v302 = vunpack.c.l.b16 %v99
    %v303 = vunpack.c.l.b16 %v109
    %v304 = vunpack.c.l.b16 %v119
    %v305 = vunpack.c.l.b16 %v133
    %v306 = vunpack.c.l.b16 %v143
    %v307 = vunpack.c.l.b16 %v153
    %v308 = vunpack.c.l.b16 %v163
    %v309 = vpack.c.b16 %v302, %v301
    %v310 = vpack.c.b16 %v304, %v303
    %v311 = vpack.c.b16 %v306, %v305
    %v312 = vpack.c.b16 %v308, %v307
    %v317 = vunpack.c.l.b16 %v180
    %v318 = vunpack.c.l.b16 %v183
    %v319 = vunpack.c.l.b16 %v186
    %v320 = vunpack.c.l.b16 %v189
    %v321 = vunpack.c.l.b16 %v193
    %v322 = vunpack.c.l.b16 %v196
    %v323 = vunpack.c.l.b16 %v199
    %v324 = vunpack.c.l.b16 %v202
    %v325 = vpack.c.b16 %v318, %v317
    %v326 = vpack.c.b16 %v320, %v319
    %v327 = vpack.c.b16 %v322, %v321
    %v328 = vpack.c.b16 %v324, %v323
    %v333 = vunpack.c.l.b16 %v213
    %v334 = vunpack.c.l.b16 %v218
    %v335 = vunpack.c.l.b16 %v223
    %v336 = vunpack.c.l.b16 %v230
    %v337 = vunpack.c.l.b16 %v238
    %v338 = vunpack.c.l.b16 %v243
    %v339 = vunpack.c.l.b16 %v248
    %v340 = vunpack.c.l.b16 %v255
    %v341 = vpack.c.b16 %v334, %v333
    %v342 = vpack.c.b16 %v336, %v335
    %v343 = vpack.c.b16 %v338, %v337
    %v344 = vpack.c.b16 %v340, %v339
    %v349 = vunpack.c.l.b16 %v262
    %v350 = vunpack.c.l.b16 %v265
    %v351 = vunpack.c.l.b16 %v268
    %v352 = vunpack.c.l.b16 %v271
    %v353 = vunpack.c.l.b16 %v275
    %v354 = vunpack.c.l.b16 %v278
    %v355 = vunpack.c.l.b16 %v281
    %v356 = vunpack.c.l.b16 %v284
    %v357 = vpack.c.b16 %v350, %v349
    %v358 = vpack.c.b16 %v352, %v351
    %v359 = vpack.c.b16 %v354, %v353
    %v360 = vpack.c.b16 %v356, %v355
    %v365 = vld [vmem:[#allocation5] sm:$0xff]
    %v366 = vld [vmem:[#allocation5 + $0x8] sm:$0xf]
    %v367 = vld [vmem:[#allocation5 + $0xc] sm:$0xff]
    %v368 = vld [vmem:[#allocation5 + $0x14] sm:$0xf]
    %v369 = vld [vmem:[#allocation5 + $0x18] sm:$0xff]
    %v370 = vld [vmem:[#allocation5 + $0x20] sm:$0xf]
    %v371 = vld [vmem:[#allocation5 + $0x24] sm:$0xff]
    %v372 = vld [vmem:[#allocation5 + $0x2c] sm:$0xf]
    %v373 = vld [vmem:[#allocation5 + $0x30] sm:$0xff]
    %v374 = vld [vmem:[#allocation5 + $0x38] sm:$0xf]
    %v375 = vld [vmem:[#allocation5 + $0x3c] sm:$0xff]
    %v376 = vld [vmem:[#allocation5 + $0x44] sm:$0xf]
    %v377 = vld [vmem:[#allocation5 + $0x48] sm:$0xff]
    %v378 = vld [vmem:[#allocation5 + $0x50] sm:$0xf]
    %v379 = vld [vmem:[#allocation5 + $0x54] sm:$0xff]
    %v380 = vld [vmem:[#allocation5 + $0x5c] sm:$0xf]
    %v381 = vld [vmem:[#allocation5 + $0x60] sm:$0xff]
    %v382 = vld [vmem:[#allocation5 + $0x68] sm:$0xf]
    %v383 = vld [vmem:[#allocation5 + $0x6c] sm:$0xff]
    %v384 = vld [vmem:[#allocation5 + $0x74] sm:$0xf]
    %v385 = vld [vmem:[#allocation5 + $0x78] sm:$0xff]
    %v386 = vld [vmem:[#allocation5 + $0x80] sm:$0xf]
    %v387 = vld [vmem:[#allocation5 + $0x84] sm:$0xff]
    %v388 = vld [vmem:[#allocation5 + $0x8c] sm:$0xf]
    %v389 = vld [vmem:[#allocation5 + $0x90] sm:$0xff]
    %v390 = vld [vmem:[#allocation5 + $0x98] sm:$0xf]
    %v391 = vld [vmem:[#allocation5 + $0x9c] sm:$0xff]
    %v392 = vld [vmem:[#allocation5 + $0xa4] sm:$0xf]
    %v393 = vld [vmem:[#allocation5 + $0xa8] sm:$0xff]
    %v394 = vld [vmem:[#allocation5 + $0xb0] sm:$0xf]
    %v395 = vld [vmem:[#allocation5 + $0xb4] sm:$0xff]
    %v396 = vld [vmem:[#allocation5 + $0xbc] sm:$0xf]
    %v397 = vld [vmem:[#allocation5 + $0xc0] sm:$0xff]
    %v398 = vld [vmem:[#allocation5 + $0xc8] sm:$0xf]
    %v399 = vld [vmem:[#allocation5 + $0xcc] sm:$0xff]
    %v400 = vld [vmem:[#allocation5 + $0xd4] sm:$0xf]
    %v401 = vld [vmem:[#allocation5 + $0xd8] sm:$0xff]
    %v402 = vld [vmem:[#allocation5 + $0xe0] sm:$0xf]
    %v403 = vld [vmem:[#allocation5 + $0xe4] sm:$0xff]
    %v404 = vld [vmem:[#allocation5 + $0xec] sm:$0xf]
    %v405 = vld [vmem:[#allocation5 + $0xf0] sm:$0xff]
    %v406 = vld [vmem:[#allocation5 + $0xf8] sm:$0xf]
    %v407 = vld [vmem:[#allocation5 + $0xfc] sm:$0xff]
    %v408 = vld [vmem:[#allocation5 + $0x104] sm:$0xf]
    %v409 = vld [vmem:[#allocation5 + $0x108] sm:$0xff]
    %v410 = vld [vmem:[#allocation5 + $0x110] sm:$0xf]
    %v411 = vld [vmem:[#allocation5 + $0x114] sm:$0xff]
    %v412 = vld [vmem:[#allocation5 + $0x11c] sm:$0xf]
    %v413 = vld [vmem:[#allocation5 + $0x120] sm:$0xff]
    %v414 = vld [vmem:[#allocation5 + $0x128] sm:$0xf]
    %v415 = vld [vmem:[#allocation5 + $0x12c] sm:$0xff]
    %v416 = vld [vmem:[#allocation5 + $0x134] sm:$0xf]
    %v417 = vld [vmem:[#allocation5 + $0x138] sm:$0xff]
    %v418 = vld [vmem:[#allocation5 + $0x140] sm:$0xf]
    %v419 = vld [vmem:[#allocation5 + $0x144] sm:$0xff]
    %v420 = vld [vmem:[#allocation5 + $0x14c] sm:$0xf]
    %v421 = vld [vmem:[#allocation5 + $0x150] sm:$0xff]
    %v422 = vld [vmem:[#allocation5 + $0x158] sm:$0xf]
    %v423 = vld [vmem:[#allocation5 + $0x15c] sm:$0xff]
    %v424 = vld [vmem:[#allocation5 + $0x164] sm:$0xf]
    %v425 = vld [vmem:[#allocation5 + $0x168] sm:$0xff]
    %v426 = vld [vmem:[#allocation5 + $0x170] sm:$0xf]
    %v427 = vld [vmem:[#allocation5 + $0x174] sm:$0xff]
    %v428 = vld [vmem:[#allocation5 + $0x17c] sm:$0xf]
    %v429 = vld [vmem:[#allocation5 + $0x180] sm:$0xff]
    %v430 = vld [vmem:[#allocation5 + $0x188] sm:$0xf]
    %v431 = vld [vmem:[#allocation5 + $0x18c] sm:$0xff]
    %v432 = vld [vmem:[#allocation5 + $0x194] sm:$0xf]
    %v433 = vld [vmem:[#allocation5 + $0x198] sm:$0xff]
    %v434 = vld [vmem:[#allocation5 + $0x1a0] sm:$0xf]
    %v435 = vld [vmem:[#allocation5 + $0x1a4] sm:$0xff]
    %v436 = vld [vmem:[#allocation5 + $0x1ac] sm:$0xf]
    %v437 = vld [vmem:[#allocation5 + $0x1b0] sm:$0xff]
    %v438 = vld [vmem:[#allocation5 + $0x1b8] sm:$0xf]
    %v439 = vld [vmem:[#allocation5 + $0x1bc] sm:$0xff]
    %v440 = vld [vmem:[#allocation5 + $0x1c4] sm:$0xf]
    %v441 = vld [vmem:[#allocation5 + $0x1c8] sm:$0xff]
    %v442 = vld [vmem:[#allocation5 + $0x1d0] sm:$0xf]
    %v443 = vld [vmem:[#allocation5 + $0x1d4] sm:$0xff]
    %v444 = vld [vmem:[#allocation5 + $0x1dc] sm:$0xf]
    %v445 = vld [vmem:[#allocation5 + $0x1e0] sm:$0xff]
    %v446 = vld [vmem:[#allocation5 + $0x1e8] sm:$0xf]
    %v447 = vld [vmem:[#allocation5 + $0x1ec] sm:$0xff]
    %v448 = vld [vmem:[#allocation5 + $0x1f4] sm:$0xf]
    %v449 = vld [vmem:[#allocation5 + $0x1f8] sm:$0xff]
    %v450 = vld [vmem:[#allocation5 + $0x200] sm:$0xf]
    %v451 = vld [vmem:[#allocation5 + $0x204] sm:$0xff]
    %v452 = vld [vmem:[#allocation5 + $0x20c] sm:$0xf]
    %v453 = vld [vmem:[#allocation5 + $0x210] sm:$0xff]
    %v454 = vld [vmem:[#allocation5 + $0x218] sm:$0xf]
    %v455 = vld [vmem:[#allocation5 + $0x21c] sm:$0xff]
    %v456 = vld [vmem:[#allocation5 + $0x224] sm:$0xf]
    %v457 = vld [vmem:[#allocation5 + $0x228] sm:$0xff]
    %v458 = vld [vmem:[#allocation5 + $0x230] sm:$0xf]
    %v459 = vld [vmem:[#allocation5 + $0x234] sm:$0xff]
    %v460 = vld [vmem:[#allocation5 + $0x23c] sm:$0xf]
    %v461 = vld [vmem:[#allocation5 + $0x240] sm:$0xff]
    %v462 = vld [vmem:[#allocation5 + $0x248] sm:$0xf]
    %v463 = vld [vmem:[#allocation5 + $0x24c] sm:$0xff]
    %v464 = vld [vmem:[#allocation5 + $0x254] sm:$0xf]
    %v465 = vld [vmem:[#allocation5 + $0x258] sm:$0xff]
    %v466 = vld [vmem:[#allocation5 + $0x260] sm:$0xf]
    %v467 = vld [vmem:[#allocation5 + $0x264] sm:$0xff]
    %v468 = vld [vmem:[#allocation5 + $0x26c] sm:$0xf]
    %v469 = vld [vmem:[#allocation5 + $0x270] sm:$0xff]
    %v470 = vld [vmem:[#allocation5 + $0x278] sm:$0xf]
    %v471 = vld [vmem:[#allocation5 + $0x27c] sm:$0xff]
    %v472 = vld [vmem:[#allocation5 + $0x284] sm:$0xf]
    %v473 = vld [vmem:[#allocation5 + $0x288] sm:$0xff]
    %v474 = vld [vmem:[#allocation5 + $0x290] sm:$0xf]
    %v475 = vld [vmem:[#allocation5 + $0x294] sm:$0xff]
    %v476 = vld [vmem:[#allocation5 + $0x29c] sm:$0xf]
    %v477 = vld [vmem:[#allocation5 + $0x2a0] sm:$0xff]
    %v478 = vld [vmem:[#allocation5 + $0x2a8] sm:$0xf]
    %v479 = vld [vmem:[#allocation5 + $0x2ac] sm:$0xff]
    %v480 = vld [vmem:[#allocation5 + $0x2b4] sm:$0xf]
    %v481 = vld [vmem:[#allocation5 + $0x2b8] sm:$0xff]
    %v482 = vld [vmem:[#allocation5 + $0x2c0] sm:$0xf]
    %v483 = vld [vmem:[#allocation5 + $0x2c4] sm:$0xff]
    %v484 = vld [vmem:[#allocation5 + $0x2cc] sm:$0xf]
    %v485 = vld [vmem:[#allocation5 + $0x2d0] sm:$0xff]
    %v486 = vld [vmem:[#allocation5 + $0x2d8] sm:$0xf]
    %v487 = vld [vmem:[#allocation5 + $0x2dc] sm:$0xff]
    %v488 = vld [vmem:[#allocation5 + $0x2e4] sm:$0xf]
    %v489 = vld [vmem:[#allocation5 + $0x2e8] sm:$0xff]
    %v490 = vld [vmem:[#allocation5 + $0x2f0] sm:$0xf]
    %v491 = vld [vmem:[#allocation5 + $0x2f4] sm:$0xff]
    %v492 = vld [vmem:[#allocation5 + $0x2fc] sm:$0xf]
    %v493 = vld [vmem:[#allocation5 + $0x300] sm:$0xff]
    %v494 = vld [vmem:[#allocation5 + $0x308] sm:$0xf]
    %v495 = vld [vmem:[#allocation5 + $0x30c] sm:$0xff]
    %v496 = vld [vmem:[#allocation5 + $0x314] sm:$0xf]
    %v497 = vld [vmem:[#allocation5 + $0x318] sm:$0xff]
    %v498 = vld [vmem:[#allocation5 + $0x320] sm:$0xf]
    %v499 = vld [vmem:[#allocation5 + $0x324] sm:$0xff]
    %v500 = vld [vmem:[#allocation5 + $0x32c] sm:$0xf]
    %v501 = vld [vmem:[#allocation5 + $0x330] sm:$0xff]
    %v502 = vld [vmem:[#allocation5 + $0x338] sm:$0xf]
    %v503 = vld [vmem:[#allocation5 + $0x33c] sm:$0xff]
    %v504 = vld [vmem:[#allocation5 + $0x344] sm:$0xf]
    %v505 = vld [vmem:[#allocation5 + $0x348] sm:$0xff]
    %v506 = vld [vmem:[#allocation5 + $0x350] sm:$0xf]
    %v507 = vld [vmem:[#allocation5 + $0x354] sm:$0xff]
    %v508 = vld [vmem:[#allocation5 + $0x35c] sm:$0xf]
    %v509 = vld [vmem:[#allocation5 + $0x360] sm:$0xff]
    %v510 = vld [vmem:[#allocation5 + $0x368] sm:$0xf]
    %v511 = vld [vmem:[#allocation5 + $0x36c] sm:$0xff]
    %v512 = vld [vmem:[#allocation5 + $0x374] sm:$0xf]
    %v513 = vld [vmem:[#allocation5 + $0x378] sm:$0xff]
    %v514 = vld [vmem:[#allocation5 + $0x380] sm:$0xf]
    %v515 = vld [vmem:[#allocation5 + $0x384] sm:$0xff]
    %v516 = vld [vmem:[#allocation5 + $0x38c] sm:$0xf]
    %v517 = vld [vmem:[#allocation5 + $0x390] sm:$0xff]
    %v518 = vld [vmem:[#allocation5 + $0x398] sm:$0xf]
    %v519 = vld [vmem:[#allocation5 + $0x39c] sm:$0xff]
    %v520 = vld [vmem:[#allocation5 + $0x3a4] sm:$0xf]
    %v521 = vld [vmem:[#allocation5 + $0x3a8] sm:$0xff]
    %v522 = vld [vmem:[#allocation5 + $0x3b0] sm:$0xf]
    %v523 = vld [vmem:[#allocation5 + $0x3b4] sm:$0xff]
    %v524 = vld [vmem:[#allocation5 + $0x3bc] sm:$0xf]
    %v525 = vld [vmem:[%s2] sm:$0x7]
    %v527 = vlaneseq
    %v528 = vshrl.u32 %v527, 7
    %v529 = vsub.s32 0, %v528
    %v530 = vrot.slane %v525, %v529
    %v531 = vlaneseq
    %v532 = vshrl.u32 %v531, 7
    %v533 = vsub.s32 1, %v532
    %v534 = vrot.slane %v525, %v533
    %v535 = vlaneseq
    %v536 = vshrl.u32 %v535, 7
    %v537 = vsub.s32 2, %v536
    %v538 = vrot.slane %v525, %v537
    %v702 = vunpack.c.l.b16 %v365
    %v703 = vunpack.c.h.b16 %v365
    %v704 = vunpack.c.l.b16 %v366
    %v705 = vunpack.c.l.b16 %v367
    %v706 = vunpack.c.h.b16 %v367
    %v707 = vunpack.c.l.b16 %v368
    %v708 = vunpack.c.l.b16 %v369
    %v709 = vunpack.c.h.b16 %v369
    %v710 = vunpack.c.l.b16 %v370
    %v711 = vunpack.c.l.b16 %v371
    %v712 = vunpack.c.h.b16 %v371
    %v713 = vunpack.c.l.b16 %v372
    %v714 = vunpack.c.l.b16 %v373
    %v715 = vunpack.c.h.b16 %v373
    %v716 = vunpack.c.l.b16 %v374
    %v717 = vunpack.c.l.b16 %v375
    %v718 = vunpack.c.h.b16 %v375
    %v719 = vunpack.c.l.b16 %v376
    %v720 = vunpack.c.l.b16 %v377
    %v721 = vunpack.c.h.b16 %v377
    %v722 = vunpack.c.l.b16 %v378
    %v723 = vunpack.c.l.b16 %v379
    %v724 = vunpack.c.h.b16 %v379
    %v725 = vunpack.c.l.b16 %v380
    %v726 = vunpack.c.l.b16 %v381
    %v727 = vunpack.c.h.b16 %v381
    %v728 = vunpack.c.l.b16 %v382
    %v729 = vunpack.c.l.b16 %v383
    %v730 = vunpack.c.h.b16 %v383
    %v731 = vunpack.c.l.b16 %v384
    %v732 = vunpack.c.l.b16 %v385
    %v733 = vunpack.c.h.b16 %v385
    %v734 = vunpack.c.l.b16 %v386
    %v735 = vunpack.c.l.b16 %v387
    %v736 = vunpack.c.h.b16 %v387
    %v737 = vunpack.c.l.b16 %v388
    %v738 = vunpack.c.l.b16 %v389
    %v739 = vunpack.c.h.b16 %v389
    %v740 = vunpack.c.l.b16 %v390
    %v741 = vunpack.c.l.b16 %v391
    %v742 = vunpack.c.h.b16 %v391
    %v743 = vunpack.c.l.b16 %v392
    %v744 = vunpack.c.l.b16 %v393
    %v745 = vunpack.c.h.b16 %v393
    %v746 = vunpack.c.l.b16 %v394
    %v747 = vunpack.c.l.b16 %v395
    %v748 = vunpack.c.h.b16 %v395
    %v749 = vunpack.c.l.b16 %v396
    %v750 = vunpack.c.l.b16 %v397
    %v751 = vunpack.c.h.b16 %v397
    %v752 = vunpack.c.l.b16 %v398
    %v753 = vunpack.c.l.b16 %v399
    %v754 = vunpack.c.h.b16 %v399
    %v755 = vunpack.c.l.b16 %v400
    %v756 = vunpack.c.l.b16 %v401
    %v757 = vunpack.c.h.b16 %v401
    %v758 = vunpack.c.l.b16 %v402
    %v759 = vunpack.c.l.b16 %v403
    %v760 = vunpack.c.h.b16 %v403
    %v761 = vunpack.c.l.b16 %v404
    %v762 = vunpack.c.l.b16 %v405
    %v763 = vunpack.c.h.b16 %v405
    %v764 = vunpack.c.l.b16 %v406
    %v765 = vunpack.c.l.b16 %v407
    %v766 = vunpack.c.h.b16 %v407
    %v767 = vunpack.c.l.b16 %v408
    %v768 = vunpack.c.l.b16 %v409
    %v769 = vunpack.c.h.b16 %v409
    %v770 = vunpack.c.l.b16 %v410
    %v771 = vunpack.c.l.b16 %v411
    %v772 = vunpack.c.h.b16 %v411
    %v773 = vunpack.c.l.b16 %v412
    %v774 = vunpack.c.l.b16 %v413
    %v775 = vunpack.c.h.b16 %v413
    %v776 = vunpack.c.l.b16 %v414
    %v777 = vunpack.c.l.b16 %v415
    %v778 = vunpack.c.h.b16 %v415
    %v779 = vunpack.c.l.b16 %v416
    %v780 = vunpack.c.l.b16 %v417
    %v781 = vunpack.c.h.b16 %v417
    %v782 = vunpack.c.l.b16 %v418
    %v783 = vunpack.c.l.b16 %v419
    %v784 = vunpack.c.h.b16 %v419
    %v785 = vunpack.c.l.b16 %v420
    %v786 = vunpack.c.l.b16 %v421
    %v787 = vunpack.c.h.b16 %v421
    %v788 = vunpack.c.l.b16 %v422
    %v789 = vunpack.c.l.b16 %v423
    %v790 = vunpack.c.h.b16 %v423
    %v791 = vunpack.c.l.b16 %v424
    %v792 = vunpack.c.l.b16 %v425
    %v793 = vunpack.c.h.b16 %v425
    %v794 = vunpack.c.l.b16 %v426
    %v795 = vunpack.c.l.b16 %v427
    %v796 = vunpack.c.h.b16 %v427
    %v797 = vunpack.c.l.b16 %v428
    %v798 = vunpack.c.l.b16 %v429
    %v799 = vunpack.c.h.b16 %v429
    %v800 = vunpack.c.l.b16 %v430
    %v801 = vunpack.c.l.b16 %v431
    %v802 = vunpack.c.h.b16 %v431
    %v803 = vunpack.c.l.b16 %v432
    %v804 = vunpack.c.l.b16 %v433
    %v805 = vunpack.c.h.b16 %v433
    %v806 = vunpack.c.l.b16 %v434
    %v807 = vunpack.c.l.b16 %v435
    %v808 = vunpack.c.h.b16 %v435
    %v809 = vunpack.c.l.b16 %v436
    %v810 = vunpack.c.l.b16 %v437
    %v811 = vunpack.c.h.b16 %v437
    %v812 = vunpack.c.l.b16 %v438
    %v813 = vunpack.c.l.b16 %v439
    %v814 = vunpack.c.h.b16 %v439
    %v815 = vunpack.c.l.b16 %v440
    %v816 = vunpack.c.l.b16 %v441
    %v817 = vunpack.c.h.b16 %v441
    %v818 = vunpack.c.l.b16 %v442
    %v819 = vunpack.c.l.b16 %v443
    %v820 = vunpack.c.h.b16 %v443
    %v821 = vunpack.c.l.b16 %v444
    %v822 = vunpack.c.l.b16 %v445
    %v823 = vunpack.c.h.b16 %v445
    %v824 = vunpack.c.l.b16 %v446
    %v825 = vunpack.c.l.b16 %v447
    %v826 = vunpack.c.h.b16 %v447
    %v827 = vunpack.c.l.b16 %v448
    %v828 = vunpack.c.l.b16 %v449
    %v829 = vunpack.c.h.b16 %v449
    %v830 = vunpack.c.l.b16 %v450
    %v831 = vunpack.c.l.b16 %v451
    %v832 = vunpack.c.h.b16 %v451
    %v833 = vunpack.c.l.b16 %v452
    %v834 = vunpack.c.l.b16 %v453
    %v835 = vunpack.c.h.b16 %v453
    %v836 = vunpack.c.l.b16 %v454
    %v837 = vunpack.c.l.b16 %v455
    %v838 = vunpack.c.h.b16 %v455
    %v839 = vunpack.c.l.b16 %v456
    %v840 = vunpack.c.l.b16 %v457
    %v841 = vunpack.c.h.b16 %v457
    %v842 = vunpack.c.l.b16 %v458
    %v843 = vunpack.c.l.b16 %v459
    %v844 = vunpack.c.h.b16 %v459
    %v845 = vunpack.c.l.b16 %v460
    %v846 = vunpack.c.l.b16 %v461
    %v847 = vunpack.c.h.b16 %v461
    %v848 = vunpack.c.l.b16 %v462
    %v849 = vunpack.c.l.b16 %v463
    %v850 = vunpack.c.h.b16 %v463
    %v851 = vunpack.c.l.b16 %v464
    %v852 = vunpack.c.l.b16 %v465
    %v853 = vunpack.c.h.b16 %v465
    %v854 = vunpack.c.l.b16 %v466
    %v855 = vunpack.c.l.b16 %v467
    %v856 = vunpack.c.h.b16 %v467
    %v857 = vunpack.c.l.b16 %v468
    %v858 = vunpack.c.l.b16 %v469
    %v859 = vunpack.c.h.b16 %v469
    %v860 = vunpack.c.l.b16 %v470
    %v861 = vunpack.c.l.b16 %v471
    %v862 = vunpack.c.h.b16 %v471
    %v863 = vunpack.c.l.b16 %v472
    %v864 = vunpack.c.l.b16 %v473
    %v865 = vunpack.c.h.b16 %v473
    %v866 = vunpack.c.l.b16 %v474
    %v867 = vunpack.c.l.b16 %v475
    %v868 = vunpack.c.h.b16 %v475
    %v869 = vunpack.c.l.b16 %v476
    %v870 = vunpack.c.l.b16 %v477
    %v871 = vunpack.c.h.b16 %v477
    %v872 = vunpack.c.l.b16 %v478
    %v873 = vunpack.c.l.b16 %v479
    %v874 = vunpack.c.h.b16 %v479
    %v875 = vunpack.c.l.b16 %v480
    %v876 = vunpack.c.l.b16 %v481
    %v877 = vunpack.c.h.b16 %v481
    %v878 = vunpack.c.l.b16 %v482
    %v879 = vunpack.c.l.b16 %v483
    %v880 = vunpack.c.h.b16 %v483
    %v881 = vunpack.c.l.b16 %v484
    %v882 = vunpack.c.l.b16 %v485
    %v883 = vunpack.c.h.b16 %v485
    %v884 = vunpack.c.l.b16 %v486
    %v885 = vunpack.c.l.b16 %v487
    %v886 = vunpack.c.h.b16 %v487
    %v887 = vunpack.c.l.b16 %v488
    %v888 = vunpack.c.l.b16 %v489
    %v889 = vunpack.c.h.b16 %v489
    %v890 = vunpack.c.l.b16 %v490
    %v891 = vunpack.c.l.b16 %v491
    %v892 = vunpack.c.h.b16 %v491
    %v893 = vunpack.c.l.b16 %v492
    %v894 = vunpack.c.l.b16 %v493
    %v895 = vunpack.c.h.b16 %v493
    %v896 = vunpack.c.l.b16 %v494
    %v897 = vunpack.c.l.b16 %v495
    %v898 = vunpack.c.h.b16 %v495
    %v899 = vunpack.c.l.b16 %v496
    %v900 = vunpack.c.l.b16 %v497
    %v901 = vunpack.c.h.b16 %v497
    %v902 = vunpack.c.l.b16 %v498
    %v903 = vunpack.c.l.b16 %v499
    %v904 = vunpack.c.h.b16 %v499
    %v905 = vunpack.c.l.b16 %v500
    %v906 = vunpack.c.l.b16 %v501
    %v907 = vunpack.c.h.b16 %v501
    %v908 = vunpack.c.l.b16 %v502
    %v909 = vunpack.c.l.b16 %v503
    %v910 = vunpack.c.h.b16 %v503
    %v911 = vunpack.c.l.b16 %v504
    %v912 = vunpack.c.l.b16 %v505
    %v913 = vunpack.c.h.b16 %v505
    %v914 = vunpack.c.l.b16 %v506
    %v915 = vunpack.c.l.b16 %v507
    %v916 = vunpack.c.h.b16 %v507
    %v917 = vunpack.c.l.b16 %v508
    %v918 = vunpack.c.l.b16 %v509
    %v919 = vunpack.c.h.b16 %v509
    %v920 = vunpack.c.l.b16 %v510
    %v921 = vunpack.c.l.b16 %v511
    %v922 = vunpack.c.h.b16 %v511
    %v923 = vunpack.c.l.b16 %v512
    %v924 = vunpack.c.l.b16 %v513
    %v925 = vunpack.c.h.b16 %v513
    %v926 = vunpack.c.l.b16 %v514
    %v927 = vunpack.c.l.b16 %v515
    %v928 = vunpack.c.h.b16 %v515
    %v929 = vunpack.c.l.b16 %v516
    %v930 = vunpack.c.l.b16 %v517
    %v931 = vunpack.c.h.b16 %v517
    %v932 = vunpack.c.l.b16 %v518
    %v933 = vunpack.c.l.b16 %v519
    %v934 = vunpack.c.h.b16 %v519
    %v935 = vunpack.c.l.b16 %v520
    %v936 = vunpack.c.l.b16 %v521
    %v937 = vunpack.c.h.b16 %v521
    %v938 = vunpack.c.l.b16 %v522
    %v939 = vunpack.c.l.b16 %v523
    %v940 = vunpack.c.h.b16 %v523
    %v941 = vunpack.c.l.b16 %v524
    %v942 = vpack.c.b16 %v705, %v702
    %v943 = vpack.c.b16 %v706, %v703
    %v944 = vpack.c.b16 %v707, %v704
    %v945 = vpack.c.b16 %v711, %v708
    %v946 = vpack.c.b16 %v712, %v709
    %v947 = vpack.c.b16 %v713, %v710
    %v948 = vpack.c.b16 %v717, %v714
    %v949 = vpack.c.b16 %v718, %v715
    %v950 = vpack.c.b16 %v719, %v716
    %v951 = vpack.c.b16 %v723, %v720
    %v952 = vpack.c.b16 %v724, %v721
    %v953 = vpack.c.b16 %v725, %v722
    %v954 = vpack.c.b16 %v729, %v726
    %v955 = vpack.c.b16 %v730, %v727
    %v956 = vpack.c.b16 %v731, %v728
    %v957 = vpack.c.b16 %v735, %v732
    %v958 = vpack.c.b16 %v736, %v733
    %v959 = vpack.c.b16 %v737, %v734
    %v960 = vpack.c.b16 %v741, %v738
    %v961 = vpack.c.b16 %v742, %v739
    %v962 = vpack.c.b16 %v743, %v740
    %v963 = vpack.c.b16 %v747, %v744
    %v964 = vpack.c.b16 %v748, %v745
    %v965 = vpack.c.b16 %v749, %v746
    %v966 = vpack.c.b16 %v753, %v750
    %v967 = vpack.c.b16 %v754, %v751
    %v968 = vpack.c.b16 %v755, %v752
    %v969 = vpack.c.b16 %v759, %v756
    %v970 = vpack.c.b16 %v760, %v757
    %v971 = vpack.c.b16 %v761, %v758
    %v972 = vpack.c.b16 %v765, %v762
    %v973 = vpack.c.b16 %v766, %v763
    %v974 = vpack.c.b16 %v767, %v764
    %v975 = vpack.c.b16 %v771, %v768
    %v976 = vpack.c.b16 %v772, %v769
    %v977 = vpack.c.b16 %v773, %v770
    %v978 = vpack.c.b16 %v777, %v774
    %v979 = vpack.c.b16 %v778, %v775
    %v980 = vpack.c.b16 %v779, %v776
    %v981 = vpack.c.b16 %v783, %v780
    %v982 = vpack.c.b16 %v784, %v781
    %v983 = vpack.c.b16 %v785, %v782
    %v984 = vpack.c.b16 %v789, %v786
    %v985 = vpack.c.b16 %v790, %v787
    %v986 = vpack.c.b16 %v791, %v788
    %v987 = vpack.c.b16 %v795, %v792
    %v988 = vpack.c.b16 %v796, %v793
    %v989 = vpack.c.b16 %v797, %v794
    %v990 = vpack.c.b16 %v801, %v798
    %v991 = vpack.c.b16 %v802, %v799
    %v992 = vpack.c.b16 %v803, %v800
    %v993 = vpack.c.b16 %v807, %v804
    %v994 = vpack.c.b16 %v808, %v805
    %v995 = vpack.c.b16 %v809, %v806
    %v996 = vpack.c.b16 %v813, %v810
    %v997 = vpack.c.b16 %v814, %v811
    %v998 = vpack.c.b16 %v815, %v812
    %v999 = vpack.c.b16 %v819, %v816
    %v1000 = vpack.c.b16 %v820, %v817
    %v1001 = vpack.c.b16 %v821, %v818
    %v1002 = vpack.c.b16 %v825, %v822
    %v1003 = vpack.c.b16 %v826, %v823
    %v1004 = vpack.c.b16 %v827, %v824
    %v1005 = vpack.c.b16 %v831, %v828
    %v1006 = vpack.c.b16 %v832, %v829
    %v1007 = vpack.c.b16 %v833, %v830
    %v1008 = vpack.c.b16 %v837, %v834
    %v1009 = vpack.c.b16 %v838, %v835
    %v1010 = vpack.c.b16 %v839, %v836
    %v1011 = vpack.c.b16 %v843, %v840
    %v1012 = vpack.c.b16 %v844, %v841
    %v1013 = vpack.c.b16 %v845, %v842
    %v1014 = vpack.c.b16 %v849, %v846
    %v1015 = vpack.c.b16 %v850, %v847
    %v1016 = vpack.c.b16 %v851, %v848
    %v1017 = vpack.c.b16 %v855, %v852
    %v1018 = vpack.c.b16 %v856, %v853
    %v1019 = vpack.c.b16 %v857, %v854
    %v1020 = vpack.c.b16 %v861, %v858
    %v1021 = vpack.c.b16 %v862, %v859
    %v1022 = vpack.c.b16 %v863, %v860
    %v1023 = vpack.c.b16 %v867, %v864
    %v1024 = vpack.c.b16 %v868, %v865
    %v1025 = vpack.c.b16 %v869, %v866
    %v1026 = vpack.c.b16 %v873, %v870
    %v1027 = vpack.c.b16 %v874, %v871
    %v1028 = vpack.c.b16 %v875, %v872
    %v1029 = vpack.c.b16 %v879, %v876
    %v1030 = vpack.c.b16 %v880, %v877
    %v1031 = vpack.c.b16 %v881, %v878
    %v1032 = vpack.c.b16 %v885, %v882
    %v1033 = vpack.c.b16 %v886, %v883
    %v1034 = vpack.c.b16 %v887, %v884
    %v1035 = vpack.c.b16 %v891, %v888
    %v1036 = vpack.c.b16 %v892, %v889
    %v1037 = vpack.c.b16 %v893, %v890
    %v1038 = vpack.c.b16 %v897, %v894
    %v1039 = vpack.c.b16 %v898, %v895
    %v1040 = vpack.c.b16 %v899, %v896
    %v1041 = vpack.c.b16 %v903, %v900
    %v1042 = vpack.c.b16 %v904, %v901
    %v1043 = vpack.c.b16 %v905, %v902
    %v1044 = vpack.c.b16 %v909, %v906
    %v1045 = vpack.c.b16 %v910, %v907
    %v1046 = vpack.c.b16 %v911, %v908
    %v1047 = vpack.c.b16 %v915, %v912
    %v1048 = vpack.c.b16 %v916, %v913
    %v1049 = vpack.c.b16 %v917, %v914
    %v1050 = vpack.c.b16 %v921, %v918
    %v1051 = vpack.c.b16 %v922, %v919
    %v1052 = vpack.c.b16 %v923, %v920
    %v1053 = vpack.c.b16 %v927, %v924
    %v1054 = vpack.c.b16 %v928, %v925
    %v1055 = vpack.c.b16 %v929, %v926
    %v1056 = vpack.c.b16 %v933, %v930
    %v1057 = vpack.c.b16 %v934, %v931
    %v1058 = vpack.c.b16 %v935, %v932
    %v1059 = vpack.c.b16 %v939, %v936
    %v1060 = vpack.c.b16 %v940, %v937
    %v1061 = vpack.c.b16 %v941, %v938
    %1182 = vmatprep.subr.bf16.mxu0 %v964
    %1183 = vmatpush1.bf16.msra.mxu0 %v963
    %1184 = vmatprep.subr.bf16.mxu0 %v961
    %1185 = vmatpush1.bf16.msra.mxu0 %v960
    %1186 = vmatprep.subr.bf16.mxu0 %v958
    %1187 = vmatpush1.bf16.msra.mxu0 %v957
    %1188 = vmatprep.subr.bf16.mxu0 %v955
    %1189 = vmatpush1.bf16.msra.mxu0 %v954
    %1190 = vmatprep.subr.bf16.mxu0 %v952
    %1191 = vmatpush1.bf16.msra.mxu0 %v951
    %1192 = vmatprep.subr.bf16.mxu0 %v949
    %1193 = vmatpush1.bf16.msra.mxu0 %v948
    %1194 = vmatprep.subr.bf16.mxu0 %v946
    %1195 = vmatpush1.bf16.msra.mxu0 %v945
    %1196 = vmatprep.subr.bf16.mxu0 %v943
    %1197 = vmatpush1.bf16.msra.mxu0 %v942
    %1198 = vmatprep.subr.bf16.mxu0 %v988
    %1199 = vmatpush2.bf16.msra.mxu0 %v987
    %1200 = vmatprep.subr.bf16.mxu0 %v985
    %1201 = vmatpush2.bf16.msra.mxu0 %v984
    %1202 = vmatprep.subr.bf16.mxu0 %v982
    %1203 = vmatpush2.bf16.msra.mxu0 %v981
    %1204 = vmatprep.subr.bf16.mxu0 %v979
    %1205 = vmatpush2.bf16.msra.mxu0 %v978
    %1206 = vmatprep.subr.bf16.mxu0 %v976
    %1207 = vmatpush2.bf16.msra.mxu0 %v975
    %1208 = vmatprep.subr.bf16.mxu0 %v973
    %1209 = vmatpush2.bf16.msra.mxu0 %v972
    %1210 = vmatprep.subr.bf16.mxu0 %v970
    %1211 = vmatpush2.bf16.msra.mxu0 %v969
    %1212 = vmatprep.subr.bf16.mxu0 %v967
    %1213 = vmatpush2.bf16.msra.mxu0 %v966
    %1214 = vmatprep.mubr.bf16.mxu0 %v309
    %1215 = vmatmul.mubr.bf16.gmra.mxu0 %v293
    %v1216 = vpop.f32.mrf.mxu0
    %v1217 = vadd.f32 %v530, %v1216
    %v1218 = vpop.f32.mrf.mxu0
    %v1219 = vadd.f32 %v534, %v1218
    %v1220 = vpop.f32.mrf.mxu0
    %v1221 = vadd.f32 %v530, %v1220
    %v1222 = vpop.f32.mrf.mxu0
    %v1223 = vadd.f32 %v534, %v1222
    %1224 = vmatprep.mubr.bf16.mxu0 %v310
    %1225 = vmatmul.mubr.bf16.gmra.mxu0 %v294
    %v1226 = vpop.f32.mrf.mxu0
    %v1227 = vadd.f32 %v530, %v1226
    %v1228 = vpop.f32.mrf.mxu0
    %v1229 = vadd.f32 %v534, %v1228
    %v1230 = vpop.f32.mrf.mxu0
    %v1231 = vadd.f32 %v530, %v1230
    %v1232 = vpop.f32.mrf.mxu0
    %v1233 = vadd.f32 %v534, %v1232
    %1234 = vmatprep.mubr.bf16.mxu0 %v311
    %1235 = vmatmul.mubr.bf16.gmra.mxu0 %v295
    %v1236 = vpop.f32.mrf.mxu0
    %v1237 = vadd.f32 %v530, %v1236
    %v1238 = vpop.f32.mrf.mxu0
    %v1239 = vadd.f32 %v534, %v1238
    %v1240 = vpop.f32.mrf.mxu0
    %v1241 = vadd.f32 %v530, %v1240
    %v1242 = vpop.f32.mrf.mxu0
    %v1243 = vadd.f32 %v534, %v1242
    %1244 = vmatprep.mubr.bf16.mxu0 %v312
    %1245 = vmatmul.mubr.bf16.gmra.mxu0 %v296
    %v1246 = vpop.f32.mrf.mxu0
    %v1247 = vadd.f32 %v530, %v1246
    %v1248 = vpop.f32.mrf.mxu0
    %v1249 = vadd.f32 %v534, %v1248
    %v1250 = vpop.f32.mrf.mxu0
    %v1251 = vadd.f32 %v530, %v1250
    %v1252 = vpop.f32.mrf.mxu0
    %v1253 = vadd.f32 %v534, %v1252
    %1254 = vdwg.mxu0
    %1255 = vmatprep.subr.bf16.mxu0 %v1012
    %1256 = vmatpush1.bf16.msra.mxu0 %v1011
    %1257 = vmatprep.subr.bf16.mxu0 %v1009
    %1258 = vmatpush1.bf16.msra.mxu0 %v1008
    %1259 = vmatprep.subr.bf16.mxu0 %v1006
    %1260 = vmatpush1.bf16.msra.mxu0 %v1005
    %1261 = vmatprep.subr.bf16.mxu0 %v1003
    %1262 = vmatpush1.bf16.msra.mxu0 %v1002
    %1263 = vmatprep.subr.bf16.mxu0 %v1000
    %1264 = vmatpush1.bf16.msra.mxu0 %v999
    %1265 = vmatprep.subr.bf16.mxu0 %v997
    %1266 = vmatpush1.bf16.msra.mxu0 %v996
    %1267 = vmatprep.subr.bf16.mxu0 %v994
    %1268 = vmatpush1.bf16.msra.mxu0 %v993
    %1269 = vmatprep.subr.bf16.mxu0 %v991
    %1270 = vmatpush1.bf16.msra.mxu0 %v990
    %1271 = vmatprep.subr.bf16.mxu0 %v1036
    %1272 = vmatpush2.bf16.msra.mxu0 %v1035
    %1273 = vmatprep.subr.bf16.mxu0 %v1033
    %1274 = vmatpush2.bf16.msra.mxu0 %v1032
    %1275 = vmatprep.subr.bf16.mxu0 %v1030
    %1276 = vmatpush2.bf16.msra.mxu0 %v1029
    %1277 = vmatprep.subr.bf16.mxu0 %v1027
    %1278 = vmatpush2.bf16.msra.mxu0 %v1026
    %1279 = vmatprep.subr.bf16.mxu0 %v1024
    %1280 = vmatpush2.bf16.msra.mxu0 %v1023
    %1281 = vmatprep.subr.bf16.mxu0 %v1021
    %1282 = vmatpush2.bf16.msra.mxu0 %v1020
    %1283 = vmatprep.subr.bf16.mxu0 %v1018
    %1284 = vmatpush2.bf16.msra.mxu0 %v1017
    %1285 = vmatprep.subr.bf16.mxu0 %v1015
    %1286 = vmatpush2.bf16.msra.mxu0 %v1014
    %1287 = vmatprep.mubr.bf16.mxu0 %v341
    %1288 = vmatmul.mubr.bf16.gmra.mxu0 %v325
    %v1289 = vpop.f32.mrf.mxu0
    %v1290 = vadd.f32 %v1217, %v1289
    %v1291 = vpop.f32.mrf.mxu0
    %v1292 = vadd.f32 %v1219, %v1291
    %v1293 = vpop.f32.mrf.mxu0
    %v1294 = vadd.f32 %v1221, %v1293
    %v1295 = vpop.f32.mrf.mxu0
    %v1296 = vadd.f32 %v1223, %v1295
    %1297 = vmatprep.mubr.bf16.mxu0 %v342
    %1298 = vmatmul.mubr.bf16.gmra.mxu0 %v326
    %v1299 = vpop.f32.mrf.mxu0
    %v1300 = vadd.f32 %v1227, %v1299
    %v1301 = vpop.f32.mrf.mxu0
    %v1302 = vadd.f32 %v1229, %v1301
    %v1303 = vpop.f32.mrf.mxu0
    %v1304 = vadd.f32 %v1231, %v1303
    %v1305 = vpop.f32.mrf.mxu0
    %v1306 = vadd.f32 %v1233, %v1305
    %1307 = vmatprep.mubr.bf16.mxu0 %v343
    %1308 = vmatmul.mubr.bf16.gmra.mxu0 %v327
    %v1309 = vpop.f32.mrf.mxu0
    %v1310 = vadd.f32 %v1237, %v1309
    %v1311 = vpop.f32.mrf.mxu0
    %v1312 = vadd.f32 %v1239, %v1311
    %v1313 = vpop.f32.mrf.mxu0
    %v1314 = vadd.f32 %v1241, %v1313
    %v1315 = vpop.f32.mrf.mxu0
    %v1316 = vadd.f32 %v1243, %v1315
    %1317 = vmatprep.mubr.bf16.mxu0 %v344
    %1318 = vmatmul.mubr.bf16.gmra.mxu0 %v328
    %v1319 = vpop.f32.mrf.mxu0
    %v1320 = vadd.f32 %v1247, %v1319
    %v1321 = vpop.f32.mrf.mxu0
    %v1322 = vadd.f32 %v1249, %v1321
    %v1323 = vpop.f32.mrf.mxu0
    %v1324 = vadd.f32 %v1251, %v1323
    %v1325 = vpop.f32.mrf.mxu0
    %v1326 = vadd.f32 %v1253, %v1325
    %1327 = vdwg.mxu0
    %1328 = vmatprep.subr.bf16.mxu0 %v1060
    %1329 = vmatpush1.bf16.msra.mxu0 %v1059
    %1330 = vmatprep.subr.bf16.mxu0 %v1057
    %1331 = vmatpush1.bf16.msra.mxu0 %v1056
    %1332 = vmatprep.subr.bf16.mxu0 %v1054
    %1333 = vmatpush1.bf16.msra.mxu0 %v1053
    %1334 = vmatprep.subr.bf16.mxu0 %v1051
    %1335 = vmatpush1.bf16.msra.mxu0 %v1050
    %1336 = vmatprep.subr.bf16.mxu0 %v1048
    %1337 = vmatpush1.bf16.msra.mxu0 %v1047
    %1338 = vmatprep.subr.bf16.mxu0 %v1045
    %1339 = vmatpush1.bf16.msra.mxu0 %v1044
    %1340 = vmatprep.subr.bf16.mxu0 %v1042
    %1341 = vmatpush1.bf16.msra.mxu0 %v1041
    %1342 = vmatprep.subr.bf16.mxu0 %v1039
    %1343 = vmatpush1.bf16.msra.mxu0 %v1038
    %1344 = vmatprep.subr.bf16.mxu0 0
    %1345 = vmatpush2.bf16.msra.mxu0 0
    %1346 = vmatprep.subr.bf16.mxu0 0
    %1347 = vmatpush2.bf16.msra.mxu0 0
    %1348 = vmatprep.subr.bf16.mxu0 0
    %1349 = vmatpush2.bf16.msra.mxu0 0
    %1350 = vmatprep.subr.bf16.mxu0 0
    %1351 = vmatpush2.bf16.msra.mxu0 0
    %1352 = vmatprep.subr.bf16.mxu0 0
    %1353 = vmatpush2.bf16.msra.mxu0 0
    %1354 = vmatprep.subr.bf16.mxu0 0
    %1355 = vmatpush2.bf16.msra.mxu0 0
    %1356 = vmatprep.subr.bf16.mxu0 0
    %1357 = vmatpush2.bf16.msra.mxu0 0
    %1358 = vmatprep.subr.bf16.mxu0 0
    %1359 = vmatpush2.bf16.msra.mxu0 0
    %1360 = vmatprep.mubr.bf16.mxu0 0
    %1361 = vmatmul.mubr.bf16.gmra.mxu0 %v357
    %v1362 = vpop.f32.mrf.mxu0
    %v1363 = vadd.f32 %v1290, %v1362
    %v1364 = vpop.f32.mrf.mxu0
    %v1365 = vadd.f32 %v1292, %v1364
    %v1366 = vpop.f32.mrf.mxu0
    %v1367 = vadd.f32 %v1294, %v1366
    %v1368 = vpop.f32.mrf.mxu0
    %v1369 = vadd.f32 %v1296, %v1368
    %1370 = vmatprep.mubr.bf16.mxu0 0
    %1371 = vmatmul.mubr.bf16.gmra.mxu0 %v358
    %v1372 = vpop.f32.mrf.mxu0
    %v1373 = vadd.f32 %v1300, %v1372
    %v1374 = vpop.f32.mrf.mxu0
    %v1375 = vadd.f32 %v1302, %v1374
    %v1376 = vpop.f32.mrf.mxu0
    %v1377 = vadd.f32 %v1304, %v1376
    %v1378 = vpop.f32.mrf.mxu0
    %v1379 = vadd.f32 %v1306, %v1378
    %1380 = vmatprep.mubr.bf16.mxu0 0
    %1381 = vmatmul.mubr.bf16.gmra.mxu0 %v359
    %v1382 = vpop.f32.mrf.mxu0
    %v1383 = vadd.f32 %v1310, %v1382
    %v1384 = vpop.f32.mrf.mxu0
    %v1385 = vadd.f32 %v1312, %v1384
    %v1386 = vpop.f32.mrf.mxu0
    %v1387 = vadd.f32 %v1314, %v1386
    %v1388 = vpop.f32.mrf.mxu0
    %v1389 = vadd.f32 %v1316, %v1388
    %1390 = vmatprep.mubr.bf16.mxu0 0
    %1391 = vmatmul.mubr.bf16.gmra.mxu0 %v360
    %v1392 = vpop.f32.mrf.mxu0
    %v1393 = vadd.f32 %v1320, %v1392
    %v1394 = vpop.f32.mrf.mxu0
    %v1395 = vadd.f32 %v1322, %v1394
    %v1396 = vpop.f32.mrf.mxu0
    %v1397 = vadd.f32 %v1324, %v1396
    %v1398 = vpop.f32.mrf.mxu0
    %v1399 = vadd.f32 %v1326, %v1398
    %1400 = vdwg.mxu0
    %1401 = vmatprep.subr.bf16.mxu0 0
    %1402 = vmatpush1.bf16.msra.mxu0 %v965
    %1403 = vmatprep.subr.bf16.mxu0 0
    %1404 = vmatpush1.bf16.msra.mxu0 %v962
    %1405 = vmatprep.subr.bf16.mxu0 0
    %1406 = vmatpush1.bf16.msra.mxu0 %v959
    %1407 = vmatprep.subr.bf16.mxu0 0
    %1408 = vmatpush1.bf16.msra.mxu0 %v956
    %1409 = vmatprep.subr.bf16.mxu0 0
    %1410 = vmatpush1.bf16.msra.mxu0 %v953
    %1411 = vmatprep.subr.bf16.mxu0 0
    %1412 = vmatpush1.bf16.msra.mxu0 %v950
    %1413 = vmatprep.subr.bf16.mxu0 0
    %1414 = vmatpush1.bf16.msra.mxu0 %v947
    %1415 = vmatprep.subr.bf16.mxu0 0
    %1416 = vmatpush1.bf16.msra.mxu0 %v944
    %1417 = vmatprep.subr.bf16.mxu0 0
    %1418 = vmatpush2.bf16.msra.mxu0 %v989
    %1419 = vmatprep.subr.bf16.mxu0 0
    %1420 = vmatpush2.bf16.msra.mxu0 %v986
    %1421 = vmatprep.subr.bf16.mxu0 0
    %1422 = vmatpush2.bf16.msra.mxu0 %v983
    %1423 = vmatprep.subr.bf16.mxu0 0
    %1424 = vmatpush2.bf16.msra.mxu0 %v980
    %1425 = vmatprep.subr.bf16.mxu0 0
    %1426 = vmatpush2.bf16.msra.mxu0 %v977
    %1427 = vmatprep.subr.bf16.mxu0 0
    %1428 = vmatpush2.bf16.msra.mxu0 %v974
    %1429 = vmatprep.subr.bf16.mxu0 0
    %1430 = vmatpush2.bf16.msra.mxu0 %v971
    %1431 = vmatprep.subr.bf16.mxu0 0
    %1432 = vmatpush2.bf16.msra.mxu0 %v968
    %1433 = vmatprep.mubr.bf16.mxu0 %v309
    %1434 = vmatmul.mubr.bf16.gmra.mxu0 %v293
    %v1435 = vpop.f32.mrf.mxu0
    %v1436 = vadd.f32 %v538, %v1435
    %v1437 = vpop.f32.mrf.mxu0
    %v1438 = vpop.f32.mrf.mxu0
    %v1439 = vadd.f32 %v538, %v1438
    %v1440 = vpop.f32.mrf.mxu0
    %1441 = vmatprep.mubr.bf16.mxu0 %v310
    %1442 = vmatmul.mubr.bf16.gmra.mxu0 %v294
    %v1443 = vpop.f32.mrf.mxu0
    %v1444 = vadd.f32 %v538, %v1443
    %v1445 = vpop.f32.mrf.mxu0
    %v1446 = vpop.f32.mrf.mxu0
    %v1447 = vadd.f32 %v538, %v1446
    %v1448 = vpop.f32.mrf.mxu0
    %1449 = vmatprep.mubr.bf16.mxu0 %v311
    %1450 = vmatmul.mubr.bf16.gmra.mxu0 %v295
    %v1451 = vpop.f32.mrf.mxu0
    %v1452 = vadd.f32 %v538, %v1451
    %v1453 = vpop.f32.mrf.mxu0
    %v1454 = vpop.f32.mrf.mxu0
    %v1455 = vadd.f32 %v538, %v1454
    %v1456 = vpop.f32.mrf.mxu0
    %1457 = vmatprep.mubr.bf16.mxu0 %v312
    %1458 = vmatmul.mubr.bf16.gmra.mxu0 %v296
    %v1459 = vpop.f32.mrf.mxu0
    %v1460 = vadd.f32 %v538, %v1459
    %v1461 = vpop.f32.mrf.mxu0
    %v1462 = vpop.f32.mrf.mxu0
    %v1463 = vadd.f32 %v538, %v1462
    %v1464 = vpop.f32.mrf.mxu0
    %1465 = vdwg.mxu0
    %1466 = vmatprep.subr.bf16.mxu0 0
    %1467 = vmatpush1.bf16.msra.mxu0 %v1013
    %1468 = vmatprep.subr.bf16.mxu0 0
    %1469 = vmatpush1.bf16.msra.mxu0 %v1010
    %1470 = vmatprep.subr.bf16.mxu0 0
    %1471 = vmatpush1.bf16.msra.mxu0 %v1007
    %1472 = vmatprep.subr.bf16.mxu0 0
    %1473 = vmatpush1.bf16.msra.mxu0 %v1004
    %1474 = vmatprep.subr.bf16.mxu0 0
    %1475 = vmatpush1.bf16.msra.mxu0 %v1001
    %1476 = vmatprep.subr.bf16.mxu0 0
    %1477 = vmatpush1.bf16.msra.mxu0 %v998
    %1478 = vmatprep.subr.bf16.mxu0 0
    %1479 = vmatpush1.bf16.msra.mxu0 %v995
    %1480 = vmatprep.subr.bf16.mxu0 0
    %1481 = vmatpush1.bf16.msra.mxu0 %v992
    %1482 = vmatprep.subr.bf16.mxu0 0
    %1483 = vmatpush2.bf16.msra.mxu0 %v1037
    %1484 = vmatprep.subr.bf16.mxu0 0
    %1485 = vmatpush2.bf16.msra.mxu0 %v1034
    %1486 = vmatprep.subr.bf16.mxu0 0
    %1487 = vmatpush2.bf16.msra.mxu0 %v1031
    %1488 = vmatprep.subr.bf16.mxu0 0
    %1489 = vmatpush2.bf16.msra.mxu0 %v1028
    %1490 = vmatprep.subr.bf16.mxu0 0
    %1491 = vmatpush2.bf16.msra.mxu0 %v1025
    %1492 = vmatprep.subr.bf16.mxu0 0
    %1493 = vmatpush2.bf16.msra.mxu0 %v1022
    %1494 = vmatprep.subr.bf16.mxu0 0
    %1495 = vmatpush2.bf16.msra.mxu0 %v1019
    %1496 = vmatprep.subr.bf16.mxu0 0
    %1497 = vmatpush2.bf16.msra.mxu0 %v1016
    %1498 = vmatprep.mubr.bf16.mxu0 %v341
    %1499 = vmatmul.mubr.bf16.gmra.mxu0 %v325
    %v1500 = vpop.f32.mrf.mxu0
    %v1501 = vadd.f32 %v1436, %v1500
    %v1502 = vpop.f32.mrf.mxu0
    %v1503 = vpop.f32.mrf.mxu0
    %v1504 = vadd.f32 %v1439, %v1503
    %v1505 = vpop.f32.mrf.mxu0
    %1506 = vmatprep.mubr.bf16.mxu0 %v342
    %1507 = vmatmul.mubr.bf16.gmra.mxu0 %v326
    %v1508 = vpop.f32.mrf.mxu0
    %v1509 = vadd.f32 %v1444, %v1508
    %v1510 = vpop.f32.mrf.mxu0
    %v1511 = vpop.f32.mrf.mxu0
    %v1512 = vadd.f32 %v1447, %v1511
    %v1513 = vpop.f32.mrf.mxu0
    %1514 = vmatprep.mubr.bf16.mxu0 %v343
    %1515 = vmatmul.mubr.bf16.gmra.mxu0 %v327
    %v1516 = vpop.f32.mrf.mxu0
    %v1517 = vadd.f32 %v1452, %v1516
    %v1518 = vpop.f32.mrf.mxu0
    %v1519 = vpop.f32.mrf.mxu0
    %v1520 = vadd.f32 %v1455, %v1519
    %v1521 = vpop.f32.mrf.mxu0
    %1522 = vmatprep.mubr.bf16.mxu0 %v344
    %1523 = vmatmul.mubr.bf16.gmra.mxu0 %v328
    %v1524 = vpop.f32.mrf.mxu0
    %v1525 = vadd.f32 %v1460, %v1524
    %v1526 = vpop.f32.mrf.mxu0
    %v1527 = vpop.f32.mrf.mxu0
    %v1528 = vadd.f32 %v1463, %v1527
    %v1529 = vpop.f32.mrf.mxu0
    %1530 = vdwg.mxu0
    %1531 = vmatprep.subr.bf16.mxu0 0
    %1532 = vmatpush1.bf16.msra.mxu0 %v1061
    %1533 = vmatprep.subr.bf16.mxu0 0
    %1534 = vmatpush1.bf16.msra.mxu0 %v1058
    %1535 = vmatprep.subr.bf16.mxu0 0
    %1536 = vmatpush1.bf16.msra.mxu0 %v1055
    %1537 = vmatprep.subr.bf16.mxu0 0
    %1538 = vmatpush1.bf16.msra.mxu0 %v1052
    %1539 = vmatprep.subr.bf16.mxu0 0
    %1540 = vmatpush1.bf16.msra.mxu0 %v1049
    %1541 = vmatprep.subr.bf16.mxu0 0
    %1542 = vmatpush1.bf16.msra.mxu0 %v1046
    %1543 = vmatprep.subr.bf16.mxu0 0
    %1544 = vmatpush1.bf16.msra.mxu0 %v1043
    %1545 = vmatprep.subr.bf16.mxu0 0
    %1546 = vmatpush1.bf16.msra.mxu0 %v1040
    %1547 = vmatprep.subr.bf16.mxu0 0
    %1548 = vmatpush2.bf16.msra.mxu0 0
    %1549 = vmatprep.subr.bf16.mxu0 0
    %1550 = vmatpush2.bf16.msra.mxu0 0
    %1551 = vmatprep.subr.bf16.mxu0 0
    %1552 = vmatpush2.bf16.msra.mxu0 0
    %1553 = vmatprep.subr.bf16.mxu0 0
    %1554 = vmatpush2.bf16.msra.mxu0 0
    %1555 = vmatprep.subr.bf16.mxu0 0
    %1556 = vmatpush2.bf16.msra.mxu0 0
    %1557 = vmatprep.subr.bf16.mxu0 0
    %1558 = vmatpush2.bf16.msra.mxu0 0
    %1559 = vmatprep.subr.bf16.mxu0 0
    %1560 = vmatpush2.bf16.msra.mxu0 0
    %1561 = vmatprep.subr.bf16.mxu0 0
    %1562 = vmatpush2.bf16.msra.mxu0 0
    %1563 = vmatprep.mubr.bf16.mxu0 0
    %1564 = vmatmul.mubr.bf16.gmra.mxu0 %v357
    %v1565 = vpop.f32.mrf.mxu0
    %v1566 = vadd.f32 %v1501, %v1565
    %v1567 = vpop.f32.mrf.mxu0
    %v1568 = vpop.f32.mrf.mxu0
    %v1569 = vadd.f32 %v1504, %v1568
    %v1570 = vpop.f32.mrf.mxu0
    %1571 = vmatprep.mubr.bf16.mxu0 0
    %1572 = vmatmul.mubr.bf16.gmra.mxu0 %v358
    %v1573 = vpop.f32.mrf.mxu0
    %v1574 = vadd.f32 %v1509, %v1573
    %v1575 = vpop.f32.mrf.mxu0
    %v1576 = vpop.f32.mrf.mxu0
    %v1577 = vadd.f32 %v1512, %v1576
    %v1578 = vpop.f32.mrf.mxu0
    %1579 = vmatprep.mubr.bf16.mxu0 0
    %1580 = vmatmul.mubr.bf16.gmra.mxu0 %v359
    %v1581 = vpop.f32.mrf.mxu0
    %v1582 = vadd.f32 %v1517, %v1581
    %v1583 = vpop.f32.mrf.mxu0
    %v1584 = vpop.f32.mrf.mxu0
    %v1585 = vadd.f32 %v1520, %v1584
    %v1586 = vpop.f32.mrf.mxu0
    %1587 = vmatprep.mubr.bf16.mxu0 0
    %1588 = vmatmul.mubr.bf16.gmra.mxu0 %v360
    %v1589 = vpop.f32.mrf.mxu0
    %v1590 = vadd.f32 %v1525, %v1589
    %v1591 = vpop.f32.mrf.mxu0
    %v1592 = vpop.f32.mrf.mxu0
    %v1593 = vadd.f32 %v1528, %v1592
    %v1594 = vpop.f32.mrf.mxu0
    %1595 = vdwg.mxu0
    %v1596 = vmax.f32 %v1363, 0.0
    %v1597 = vmax.f32 %v1365, 0.0
    %v1598 = vmax.f32 %v1566, 0.0
    %v1599 = vmax.f32 %v1367, 0.0
    %v1600 = vmax.f32 %v1369, 0.0
    %v1601 = vmax.f32 %v1569, 0.0
    %v1602 = vmax.f32 %v1373, 0.0
    %v1603 = vmax.f32 %v1375, 0.0
    %v1604 = vmax.f32 %v1574, 0.0
    %v1605 = vmax.f32 %v1377, 0.0
    %v1606 = vmax.f32 %v1379, 0.0
    %v1607 = vmax.f32 %v1577, 0.0
    %v1608 = vmax.f32 %v1383, 0.0
    %v1609 = vmax.f32 %v1385, 0.0
    %v1610 = vmax.f32 %v1582, 0.0
    %v1611 = vmax.f32 %v1387, 0.0
    %v1612 = vmax.f32 %v1389, 0.0
    %v1613 = vmax.f32 %v1585, 0.0
    %v1614 = vmax.f32 %v1393, 0.0
    %v1615 = vmax.f32 %v1395, 0.0
    %v1616 = vmax.f32 %v1590, 0.0
    %v1617 = vmax.f32 %v1397, 0.0
    %v1618 = vmax.f32 %v1399, 0.0
    %v1619 = vmax.f32 %v1593, 0.0
    %v1620 = vlaneseq
    %v1621 = vshrl.u32 %v1620, 7
    %v1622 = vadd.s32 %v1621, 8
    %v1623 = vadd.s32 %v1621, 16
    %v1624 = vadd.s32 %v1621, 24
    %v1625 = vadd.s32 %v1621, 32
    %v1626 = vadd.s32 %v1621, 40
    %v1627 = vadd.s32 %v1621, 48
    %v1628 = vadd.s32 %v1621, 56
    %vm1629 = vcmp.lt.s32.totalorder %v1621, 0
    %v1630 = vsub.s32 0, %v1621
    %v1631 = vsel %vm1629, %v1630, %v1621
    %v1632 = vshrl.u32 %v1631, 5
    %v1633 = vand.u32 %v1631, 31
    %v1634 = vsub.s32 0, %v1633
    %v1635 = vsel %vm1629, %v1634, %v1633
    %vm1636 = vcmp.lt.s32.totalorder %v1622, 0
    %v1637 = vsub.s32 0, %v1622
    %v1638 = vsel %vm1636, %v1637, %v1622
    %v1639 = vshrl.u32 %v1638, 5
    %v1640 = vand.u32 %v1638, 31
    %v1641 = vsub.s32 0, %v1640
    %v1642 = vsel %vm1636, %v1641, %v1640
    %vm1643 = vcmp.lt.s32.totalorder %v1623, 0
    %v1644 = vsub.s32 0, %v1623
    %v1645 = vsel %vm1643, %v1644, %v1623
    %v1646 = vshrl.u32 %v1645, 5
    %v1647 = vand.u32 %v1645, 31
    %v1648 = vsub.s32 0, %v1647
    %v1649 = vsel %vm1643, %v1648, %v1647
    %vm1650 = vcmp.lt.s32.totalorder %v1624, 0
    %v1651 = vsub.s32 0, %v1624
    %v1652 = vsel %vm1650, %v1651, %v1624
    %v1653 = vshrl.u32 %v1652, 5
    %v1654 = vand.u32 %v1652, 31
    %v1655 = vsub.s32 0, %v1654
    %v1656 = vsel %vm1650, %v1655, %v1654
    %vm1657 = vcmp.lt.s32.totalorder %v1625, 0
    %v1658 = vsub.s32 0, %v1625
    %v1659 = vsel %vm1657, %v1658, %v1625
    %v1660 = vshrl.u32 %v1659, 5
    %v1661 = vand.u32 %v1659, 31
    %v1662 = vsub.s32 0, %v1661
    %v1663 = vsel %vm1657, %v1662, %v1661
    %vm1664 = vcmp.lt.s32.totalorder %v1626, 0
    %v1665 = vsub.s32 0, %v1626
    %v1666 = vsel %vm1664, %v1665, %v1626
    %v1667 = vshrl.u32 %v1666, 5
    %v1668 = vand.u32 %v1666, 31
    %v1669 = vsub.s32 0, %v1668
    %v1670 = vsel %vm1664, %v1669, %v1668
    %vm1671 = vcmp.lt.s32.totalorder %v1627, 0
    %v1672 = vsub.s32 0, %v1627
    %v1673 = vsel %vm1671, %v1672, %v1627
    %v1674 = vshrl.u32 %v1673, 5
    %v1675 = vand.u32 %v1673, 31
    %v1676 = vsub.s32 0, %v1675
    %v1677 = vsel %vm1671, %v1676, %v1675
    %vm1678 = vcmp.lt.s32.totalorder %v1628, 0
    %v1679 = vsub.s32 0, %v1628
    %v1680 = vsel %vm1678, %v1679, %v1628
    %v1681 = vshrl.u32 %v1680, 5
    %v1682 = vand.u32 %v1680, 31
    %v1683 = vsub.s32 0, %v1682
    %v1684 = vsel %vm1678, %v1683, %v1682
    %vm1685 = vcmp.ne.s32.totalorder %v1635, 0
    %vm1686 = vcmp.ne.s32.totalorder %v1642, 0
    %vm1687 = vcmp.ne.s32.totalorder %v1649, 0
    %vm1688 = vcmp.ne.s32.totalorder %v1656, 0
    %vm1689 = vcmp.ne.s32.totalorder %v1663, 0
    %vm1690 = vcmp.ne.s32.totalorder %v1670, 0
    %vm1691 = vcmp.ne.s32.totalorder %v1677, 0
    %vm1692 = vcmp.ne.s32.totalorder %v1684, 0
    %vm1693 = vcmp.lt.s32.totalorder %v1635, 0
    %vm1694 = vcmp.lt.s32.totalorder %v1642, 0
    %vm1695 = vcmp.lt.s32.totalorder %v1649, 0
    %vm1696 = vcmp.lt.s32.totalorder %v1656, 0
    %vm1697 = vcmp.lt.s32.totalorder %v1663, 0
    %vm1698 = vcmp.lt.s32.totalorder %v1670, 0
    %vm1699 = vcmp.lt.s32.totalorder %v1677, 0
    %vm1700 = vcmp.lt.s32.totalorder %v1684, 0
    %vm1701 = vmand %vm1693, %vm1685
    %vm1702 = vmand %vm1694, %vm1686
    %vm1703 = vmand %vm1695, %vm1687
    %vm1704 = vmand %vm1696, %vm1688
    %vm1705 = vmand %vm1697, %vm1689
    %vm1706 = vmand %vm1698, %vm1690
    %vm1707 = vmand %vm1699, %vm1691
    %vm1708 = vmand %vm1700, %vm1692
    %v1709 = vadd.s32 %v1635, 32
    %v1710 = vadd.s32 %v1642, 32
    %v1711 = vadd.s32 %v1649, 32
    %v1712 = vadd.s32 %v1656, 32
    %v1713 = vadd.s32 %v1663, 32
    %v1714 = vadd.s32 %v1670, 32
    %v1715 = vadd.s32 %v1677, 32
    %v1716 = vadd.s32 %v1684, 32
    %v1717 = vsel %vm1701, %v1709, %v1635
    %v1718 = vsel %vm1702, %v1710, %v1642
    %v1719 = vsel %vm1703, %v1711, %v1649
    %v1720 = vsel %vm1704, %v1712, %v1656
    %v1721 = vsel %vm1705, %v1713, %v1663
    %v1722 = vsel %vm1706, %v1714, %v1670
    %v1723 = vsel %vm1707, %v1715, %v1677
    %v1724 = vsel %vm1708, %v1716, %v1684
    %v1725 = vlaneseq
    %v1726 = vshrl.u32 %v1725, 7
    %v1727 = vsub.s32 0, %v1726
    %v1728 = vlaneseq
    %v1729 = vshrl.u32 %v1728, 7
    %v1730 = vsub.s32 0, %v1729
    %v1731 = vlaneseq
    %v1732 = vshrl.u32 %v1731, 7
    %v1733 = vsub.s32 0, %v1732
    %vm1734 = vcmp.lt.s32.totalorder %v1717, 18
    %vm1735 = vcmp.lt.s32.totalorder %v1717, 19
    %vm1736 = vcmp.lt.s32.totalorder %v1717, 20
    %vm1737 = vcmp.lt.s32.totalorder %v1718, 18
    %vm1738 = vcmp.lt.s32.totalorder %v1718, 19
    %vm1739 = vcmp.lt.s32.totalorder %v1718, 20
    %vm1740 = vcmp.lt.s32.totalorder %v1719, 18
    %vm1741 = vcmp.lt.s32.totalorder %v1719, 19
    %vm1742 = vcmp.lt.s32.totalorder %v1719, 20
    %vm1743 = vcmp.lt.s32.totalorder %v1720, 18
    %vm1744 = vcmp.lt.s32.totalorder %v1720, 19
    %vm1745 = vcmp.lt.s32.totalorder %v1720, 20
    %vm1746 = vcmp.lt.s32.totalorder %v1721, 18
    %vm1747 = vcmp.lt.s32.totalorder %v1721, 19
    %vm1748 = vcmp.lt.s32.totalorder %v1721, 20
    %vm1749 = vcmp.lt.s32.totalorder %v1722, 18
    %vm1750 = vcmp.lt.s32.totalorder %v1722, 19
    %vm1751 = vcmp.lt.s32.totalorder %v1722, 20
    %vm1752 = vcmp.lt.s32.totalorder %v1723, 18
    %vm1753 = vcmp.lt.s32.totalorder %v1723, 19
    %vm1754 = vcmp.lt.s32.totalorder %v1723, 20
    %vm1755 = vcmp.lt.s32.totalorder %v1724, 18
    %vm1756 = vcmp.lt.s32.totalorder %v1724, 19
    %vm1757 = vcmp.lt.s32.totalorder %v1724, 20
    %v1758 = vsel %vm1734, %v1596, 0.0
    %v1759 = vsel %vm1735, %v1597, 0.0
    %v1760 = vsel %vm1736, %v1598, 0.0
    %v1761 = vsel %vm1737, %v1599, 0.0
    %v1762 = vsel %vm1738, %v1600, 0.0
    %v1763 = vsel %vm1739, %v1601, 0.0
    %v1764 = vsel %vm1740, %v1602, 0.0
    %v1765 = vsel %vm1741, %v1603, 0.0
    %v1766 = vsel %vm1742, %v1604, 0.0
    %v1767 = vsel %vm1743, %v1605, 0.0
    %v1768 = vsel %vm1744, %v1606, 0.0
    %v1769 = vsel %vm1745, %v1607, 0.0
    %v1770 = vsel %vm1746, %v1608, 0.0
    %v1771 = vsel %vm1747, %v1609, 0.0
    %v1772 = vsel %vm1748, %v1610, 0.0
    %v1773 = vsel %vm1749, %v1611, 0.0
    %v1774 = vsel %vm1750, %v1612, 0.0
    %v1775 = vsel %vm1751, %v1613, 0.0
    %v1776 = vsel %vm1752, %v1614, 0.0
    %v1777 = vsel %vm1753, %v1615, 0.0
    %v1778 = vsel %vm1754, %v1616, 0.0
    %v1779 = vsel %vm1755, %v1617, 0.0
    %v1780 = vsel %vm1756, %v1618, 0.0
    %v1781 = vsel %vm1757, %v1619, 0.0
    %v1782 = vmax.f32 %v1758, %v1761
    %v1783 = vmax.f32 %v1782, %v1764
    %v1784 = vmax.f32 %v1783, %v1767
    %v1785 = vrot.slane %v1784, 4
    %v1786 = vmax.f32 %v1784, %v1785
    %v1787 = vrot.slane %v1786, 2
    %v1788 = vmax.f32 %v1786, %v1787
    %v1789 = vrot.slane %v1788, 1
    %v1790 = vmax.f32 %v1788, %v1789
    %v1791 = vmax.f32 %v1759, %v1762
    %v1792 = vmax.f32 %v1791, %v1765
    %v1793 = vmax.f32 %v1792, %v1768
    %v1794 = vrot.slane %v1793, 4
    %v1795 = vmax.f32 %v1793, %v1794
    %v1796 = vrot.slane %v1795, 2
    %v1797 = vmax.f32 %v1795, %v1796
    %v1798 = vrot.slane %v1797, 1
    %v1799 = vmax.f32 %v1797, %v1798
    %v1800 = vmax.f32 %v1760, %v1763
    %v1801 = vmax.f32 %v1800, %v1766
    %v1802 = vmax.f32 %v1801, %v1769
    %v1803 = vrot.slane %v1802, 4
    %v1804 = vmax.f32 %v1802, %v1803
    %v1805 = vrot.slane %v1804, 2
    %v1806 = vmax.f32 %v1804, %v1805
    %v1807 = vrot.slane %v1806, 1
    %v1808 = vmax.f32 %v1806, %v1807
    %v1809 = vmax.f32 %v1770, %v1773
    %v1810 = vmax.f32 %v1809, %v1776
    %v1811 = vmax.f32 %v1810, %v1779
    %v1812 = vrot.slane %v1811, 4
    %v1813 = vmax.f32 %v1811, %v1812
    %v1814 = vrot.slane %v1813, 2
    %v1815 = vmax.f32 %v1813, %v1814
    %v1816 = vrot.slane %v1815, 1
    %v1817 = vmax.f32 %v1815, %v1816
    %v1818 = vmax.f32 %v1771, %v1774
    %v1819 = vmax.f32 %v1818, %v1777
    %v1820 = vmax.f32 %v1819, %v1780
    %v1821 = vrot.slane %v1820, 4
    %v1822 = vmax.f32 %v1820, %v1821
    %v1823 = vrot.slane %v1822, 2
    %v1824 = vmax.f32 %v1822, %v1823
    %v1825 = vrot.slane %v1824, 1
    %v1826 = vmax.f32 %v1824, %v1825
    %v1827 = vmax.f32 %v1772, %v1775
    %v1828 = vmax.f32 %v1827, %v1778
    %v1829 = vmax.f32 %v1828, %v1781
    %v1830 = vrot.slane %v1829, 4
    %v1831 = vmax.f32 %v1829, %v1830
    %v1832 = vrot.slane %v1831, 2
    %v1833 = vmax.f32 %v1831, %v1832
    %v1834 = vrot.slane %v1833, 1
    %v1835 = vmax.f32 %v1833, %v1834
    %v1836 = vld [vmem:[#allocation7] sm:$0xff]
    %v1837 = vld [vmem:[#allocation7 + $0x8] sm:$0xff]
    %v1838 = vld [vmem:[#allocation7 + $0x10] sm:$0xff]
    %v1839 = vld [vmem:[#allocation7 + $0x18] sm:$0xff]
    %v1840 = vld [vmem:[#allocation7 + $0x20] sm:$0xff]
    %v1841 = vld [vmem:[#allocation7 + $0x28] sm:$0xff]
    %v1842 = vld [vmem:[#allocation7 + $0x30] sm:$0xff]
    %v1843 = vld [vmem:[#allocation7 + $0x38] sm:$0xff]
    %v1844 = vld [vmem:[#allocation7 + $0x40] sm:$0xff]
    %v1845 = vld [vmem:[#allocation7 + $0x48] sm:$0xff]
    %v1846 = vld [vmem:[#allocation7 + $0x50] sm:$0xff]
    %v1847 = vld [vmem:[#allocation7 + $0x58] sm:$0xff]
    %v1848 = vld [vmem:[#allocation7 + $0x60] sm:$0xff]
    %v1849 = vld [vmem:[#allocation7 + $0x68] sm:$0xff]
    %v1850 = vld [vmem:[#allocation7 + $0x70] sm:$0xff]
    %v1851 = vld [vmem:[#allocation7 + $0x78] sm:$0xff]
    %v1852 = vld [vmem:[#allocation7 + $0x80] sm:$0xff]
    %v1853 = vld [vmem:[#allocation7 + $0x88] sm:$0xff]
    %v1854 = vld [vmem:[#allocation7 + $0x90] sm:$0xff]
    %v1855 = vld [vmem:[#allocation7 + $0x98] sm:$0xff]
    %v1856 = vld [vmem:[#allocation7 + $0xa0] sm:$0xff]
    %v1857 = vld [vmem:[#allocation7 + $0xa8] sm:$0xff]
    %v1858 = vld [vmem:[#allocation7 + $0xb0] sm:$0xff]
    %v1859 = vld [vmem:[#allocation7 + $0xb8] sm:$0xff]
    %v1860 = vld [vmem:[#allocation7 + $0xc0] sm:$0xff]
    %v1861 = vld [vmem:[#allocation7 + $0xc8] sm:$0xff]
    %v1862 = vld [vmem:[#allocation7 + $0xd0] sm:$0xff]
    %v1863 = vld [vmem:[#allocation7 + $0xd8] sm:$0xff]
    %v1864 = vld [vmem:[#allocation7 + $0xe0] sm:$0xff]
    %v1865 = vld [vmem:[#allocation7 + $0xe8] sm:$0xff]
    %v1866 = vld [vmem:[#allocation7 + $0xf0] sm:$0xff]
    %v1867 = vld [vmem:[#allocation7 + $0xf8] sm:$0xff]
    %v1868 = vld [vmem:[#allocation7 + $0x100] sm:$0xff]
    %v1869 = vld [vmem:[#allocation7 + $0x108] sm:$0xff]
    %v1870 = vld [vmem:[#allocation7 + $0x110] sm:$0xff]
    %v1871 = vld [vmem:[#allocation7 + $0x118] sm:$0xff]
    %v1872 = vld [vmem:[#allocation7 + $0x120] sm:$0xff]
    %v1873 = vld [vmem:[#allocation7 + $0x128] sm:$0xff]
    %v1874 = vld [vmem:[#allocation7 + $0x130] sm:$0xff]
    %v1875 = vld [vmem:[#allocation7 + $0x138] sm:$0xff]
    %v1876 = vld [vmem:[#allocation7 + $0x140] sm:$0xff]
    %v1877 = vld [vmem:[#allocation7 + $0x148] sm:$0xff]
    %v1878 = vld [vmem:[#allocation7 + $0x150] sm:$0xff]
    %v1879 = vld [vmem:[#allocation7 + $0x158] sm:$0xff]
    %v1880 = vld [vmem:[#allocation7 + $0x160] sm:$0xff]
    %v1881 = vld [vmem:[#allocation7 + $0x168] sm:$0xff]
    %v1882 = vld [vmem:[#allocation7 + $0x170] sm:$0xff]
    %v1883 = vld [vmem:[#allocation7 + $0x178] sm:$0xff]
    %v1884 = vld [vmem:[%s4] sm:$0x1]
    %v1886 = vlaneseq
    %v1887 = vshrl.u32 %v1886, 7
    %v1888 = vsub.s32 0, %v1887
    %v1889 = vrot.slane %v1884, %v1888
    %vm1897 = vcmask 1041409
    %v1898 = vsel %vm1897, %v1817, %v1790
    %v1899 = vsel %vm1897, %v1826, %v1799
    %v1900 = vsel %vm1897, %v1835, %v1808
    %1904 = vmatprep.subr.mxu0 0.0
    %1905 = vmatpush1.msra.mxu0 %v1851
    %1906 = vmatprep.subr.mxu0 0.0
    %1907 = vmatpush1.msra.mxu0 %v1850
    %1908 = vmatprep.subr.mxu0 0.0
    %1909 = vmatpush1.msra.mxu0 %v1849
    %1910 = vmatprep.subr.mxu0 0.0
    %1911 = vmatpush1.msra.mxu0 %v1848
    %1912 = vmatprep.subr.mxu0 0.0
    %1913 = vmatpush1.msra.mxu0 %v1847
    %1914 = vmatprep.subr.mxu0 0.0
    %1915 = vmatpush1.msra.mxu0 %v1846
    %1916 = vmatprep.subr.mxu0 0.0
    %1917 = vmatpush1.msra.mxu0 %v1845
    %1918 = vmatprep.subr.mxu0 0.0
    %1919 = vmatpush1.msra.mxu0 %v1844
    %1920 = vmatprep.subr.mxu0 0.0
    %1921 = vmatpush1.msra.mxu0 %v1843
    %1922 = vmatprep.subr.mxu0 0.0
    %1923 = vmatpush1.msra.mxu0 %v1842
    %1924 = vmatprep.subr.mxu0 0.0
    %1925 = vmatpush1.msra.mxu0 %v1841
    %1926 = vmatprep.subr.mxu0 0.0
    %1927 = vmatpush1.msra.mxu0 %v1840
    %1928 = vmatprep.subr.mxu0 0.0
    %1929 = vmatpush1.msra.mxu0 %v1839
    %1930 = vmatprep.subr.mxu0 0.0
    %1931 = vmatpush1.msra.mxu0 %v1838
    %1932 = vmatprep.subr.mxu0 0.0
    %1933 = vmatpush1.msra.mxu0 %v1837
    %1934 = vmatprep.subr.mxu0 0.0
    %1935 = vmatpush1.msra.mxu0 %v1836
    %1936 = vmatprep.subr.mxu0 0.0
    %1937 = vmatpush2.msra.mxu0 %v1867
    %1938 = vmatprep.subr.mxu0 0.0
    %1939 = vmatpush2.msra.mxu0 %v1866
    %1940 = vmatprep.subr.mxu0 0.0
    %1941 = vmatpush2.msra.mxu0 %v1865
    %1942 = vmatprep.subr.mxu0 0.0
    %1943 = vmatpush2.msra.mxu0 %v1864
    %1944 = vmatprep.subr.mxu0 0.0
    %1945 = vmatpush2.msra.mxu0 %v1863
    %1946 = vmatprep.subr.mxu0 0.0
    %1947 = vmatpush2.msra.mxu0 %v1862
    %1948 = vmatprep.subr.mxu0 0.0
    %1949 = vmatpush2.msra.mxu0 %v1861
    %1950 = vmatprep.subr.mxu0 0.0
    %1951 = vmatpush2.msra.mxu0 %v1860
    %1952 = vmatprep.subr.mxu0 0.0
    %1953 = vmatpush2.msra.mxu0 %v1859
    %1954 = vmatprep.subr.mxu0 0.0
    %1955 = vmatpush2.msra.mxu0 %v1858
    %1956 = vmatprep.subr.mxu0 0.0
    %1957 = vmatpush2.msra.mxu0 %v1857
    %1958 = vmatprep.subr.mxu0 0.0
    %1959 = vmatpush2.msra.mxu0 %v1856
    %1960 = vmatprep.subr.mxu0 0.0
    %1961 = vmatpush2.msra.mxu0 %v1855
    %1962 = vmatprep.subr.mxu0 0.0
    %1963 = vmatpush2.msra.mxu0 %v1854
    %1964 = vmatprep.subr.mxu0 0.0
    %1965 = vmatpush2.msra.mxu0 %v1853
    %1966 = vmatprep.subr.mxu0 0.0
    %1967 = vmatpush2.msra.mxu0 %v1852
    %1968 = vmatprep.mubr.f32.mxu0 %v1899
    %1969 = vmatmul.mubr.f32.gmra.mxu0 %v1898
    %v1970 = vpop.f32.mrf.mxu0
    %v1971 = vadd.f32 %v1889, %v1970
    %v1972 = vpop.f32.mrf.mxu0
    %1973 = vdwg.mxu0
    %1974 = vmatprep.subr.mxu0 0.0
    %1975 = vmatpush1.msra.mxu0 %v1883
    %1976 = vmatprep.subr.mxu0 0.0
    %1977 = vmatpush1.msra.mxu0 %v1882
    %1978 = vmatprep.subr.mxu0 0.0
    %1979 = vmatpush1.msra.mxu0 %v1881
    %1980 = vmatprep.subr.mxu0 0.0
    %1981 = vmatpush1.msra.mxu0 %v1880
    %1982 = vmatprep.subr.mxu0 0.0
    %1983 = vmatpush1.msra.mxu0 %v1879
    %1984 = vmatprep.subr.mxu0 0.0
    %1985 = vmatpush1.msra.mxu0 %v1878
    %1986 = vmatprep.subr.mxu0 0.0
    %1987 = vmatpush1.msra.mxu0 %v1877
    %1988 = vmatprep.subr.mxu0 0.0
    %1989 = vmatpush1.msra.mxu0 %v1876
    %1990 = vmatprep.subr.mxu0 0.0
    %1991 = vmatpush1.msra.mxu0 %v1875
    %1992 = vmatprep.subr.mxu0 0.0
    %1993 = vmatpush1.msra.mxu0 %v1874
    %1994 = vmatprep.subr.mxu0 0.0
    %1995 = vmatpush1.msra.mxu0 %v1873
    %1996 = vmatprep.subr.mxu0 0.0
    %1997 = vmatpush1.msra.mxu0 %v1872
    %1998 = vmatprep.subr.mxu0 0.0
    %1999 = vmatpush1.msra.mxu0 %v1871
    %2000 = vmatprep.subr.mxu0 0.0
    %2001 = vmatpush1.msra.mxu0 %v1870
    %2002 = vmatprep.subr.mxu0 0.0
    %2003 = vmatpush1.msra.mxu0 %v1869
    %2004 = vmatprep.subr.mxu0 0.0
    %2005 = vmatpush1.msra.mxu0 %v1868
    %2006 = vmatprep.subr.mxu0 0.0
    %2007 = vmatpush2.msra.mxu0 0.0
    %2008 = vmatprep.subr.mxu0 0.0
    %2009 = vmatpush2.msra.mxu0 0.0
    %2010 = vmatprep.subr.mxu0 0.0
    %2011 = vmatpush2.msra.mxu0 0.0
    %2012 = vmatprep.subr.mxu0 0.0
    %2013 = vmatpush2.msra.mxu0 0.0
    %2014 = vmatprep.subr.mxu0 0.0
    %2015 = vmatpush2.msra.mxu0 0.0
    %2016 = vmatprep.subr.mxu0 0.0
    %2017 = vmatpush2.msra.mxu0 0.0
    %2018 = vmatprep.subr.mxu0 0.0
    %2019 = vmatpush2.msra.mxu0 0.0
    %2020 = vmatprep.subr.mxu0 0.0
    %2021 = vmatpush2.msra.mxu0 0.0
    %2022 = vmatprep.subr.mxu0 0.0
    %2023 = vmatpush2.msra.mxu0 0.0
    %2024 = vmatprep.subr.mxu0 0.0
    %2025 = vmatpush2.msra.mxu0 0.0
    %2026 = vmatprep.subr.mxu0 0.0
    %2027 = vmatpush2.msra.mxu0 0.0
    %2028 = vmatprep.subr.mxu0 0.0
    %2029 = vmatpush2.msra.mxu0 0.0
    %2030 = vmatprep.subr.mxu0 0.0
    %2031 = vmatpush2.msra.mxu0 0.0
    %2032 = vmatprep.subr.mxu0 0.0
    %2033 = vmatpush2.msra.mxu0 0.0
    %2034 = vmatprep.subr.mxu0 0.0
    %2035 = vmatpush2.msra.mxu0 0.0
    %2036 = vmatprep.subr.mxu0 0.0
    %2037 = vmatpush2.msra.mxu0 0.0
    %2038 = vmatprep.mubr.f32.mxu0 0.0
    %2039 = vmatmul.mubr.f32.gmra.mxu0 %v1900
    %v2040 = vpop.f32.mrf.mxu0
    %v2041 = vadd.f32 %v1971, %v2040
    %v2042 = vpop.f32.mrf.mxu0
    %2043 = vdwg.mxu0
    %2044 = vst [vmem:[#allocation8] sm:$0x3] %v2041
    // Predicated region
    $region34: #{kimcnn_pallas.1} parent=1 // pred_check
      _
    $region35: #{kimcnn_pallas.1} parent=1 // pred_check_branch
      %2046 = sbr.rel (0) target = $region37
    $region36: #{kimcnn_pallas.1} parent=1 // pred_region
      %s2048 = ssub.s32 32, 32
      %2049 = vsyncadd [#allocation4], %s2048
      %s2051 = sshll.u32 [#allocation8], 4
      %s2052 = int_to_ptr.vmem [resolvable:$true] %s2051
      %2054 = dma.vmem_to_hbm [thread:$0]  %s2052, 32, %s5, [#allocation4]
    $region37: #{kimcnn_pallas.1} parent=1 // pred_fallthru
      _
    // Predicated region
    $region38: #{kimcnn_pallas.1} parent=1 // pred_check
      _
    $region39: #{kimcnn_pallas.1} parent=1 // pred_check_branch
      %2056 = sbr.rel (0) target = $region41
    $region40: #{kimcnn_pallas.1} parent=1 // pred_region
      %2057 = dma.done [#allocation4], 32
    $region41: #{kimcnn_pallas.1} parent=1 // pred_fallthru
      _
    %2058 = vsyncpa [#allocation3], 1
    %2059 = vsyncpa [#allocation6], 1
    %2060 = vsyncpa [#allocation4], 1

</llo_original>
